<compile_context>
chip_gen: v5e
topology: v5e:2x2
jax: 0.10.0
libtpu: 0.0.40
codegen_flags: <defaults>
</compile_context>

<pallas_src>
import functools

import jax
import jax.numpy as jnp
from jax import lax
from jax.experimental import pallas as pl
from jax.experimental.pallas import tpu as pltpu

LANES = 128


def _ceil8(n):
    return ((n + 7) // 8) * 8


def _pack_slab(pieces):
    """Pack 2-D f32 pieces into one (rows, 128) slab.

    Each piece starts at an 8-aligned row and is zero-padded to 128 lanes.
    Returns (slab, [row offsets]). Offsets are Python ints (static)."""
    rows, offsets, r = [], [], 0
    for p in pieces:
        p = jnp.asarray(p, jnp.float32)
        if p.ndim == 1:
            p = p.reshape(1, -1)
        pr, pc = p.shape
        assert pc <= LANES
        offsets.append(r)
        rows.append(jnp.pad(p, ((0, _ceil8(pr) - pr), (0, LANES - pc))))
        r += _ceil8(pr)
    return jnp.concatenate(rows, axis=0), offsets


# --------------------------------------------------------------------------
# Fused forward kernel
# --------------------------------------------------------------------------
def make_kernel(cfg):
    n_m, n_p = cfg["n_m"], cfg["n_p"]
    f_m, f_p = cfg["f_m"], cfg["f_p"]
    hidden, latent = cfg["hidden"], cfg["latent"]
    heads, head_dim = cfg["heads"], cfg["head_dim"]
    po = cfg["param_offsets"]
    do = cfg["data_offsets"]
    sec_m, sec_p, sec_e = cfg["out_sections"]
    out_rows = sec_e + 8
    f32 = jnp.float32

    def _elu(x):
        # clamp arg so the unselected branch never produces inf
        return jnp.where(x > 0, x, jnp.exp(jnp.minimum(x, 0.0)) - 1.0)

    def _dense_gat(x, adj_f, wcat, bias, nheads, hdim,
                   p_rep=None, headmask=None, p_pick=None, blkmask=None):
        """Dense-mask GATConv with all heads batched (heads on sublanes).

        wcat = [W | W@a_dst | W@a_src]  (attention folded in the wrapper), so
        hp and both score vectors come from a single MXU matmul."""
        n = adj_f.shape[0]
        hc = nheads * hdim
        hps = jnp.dot(x, wcat, preferred_element_type=f32)        # (n, hc+2H)
        hp = hps[:, 0:hc]
        dst = hps[:, hc:hc + nheads]                               # (n, H)
        src = hps[:, hc + nheads:hc + 2 * nheads]                  # (n, H)

        if nheads == 1:
            dst_stack = dst                                        # (n, 1)
            ones_col = jnp.ones((n, 1), f32)
            # row-broadcast of the src scores via a K=1 outer product
            src_stack = lax.dot_general(ones_col, src,
                                        (((1,), (1,)), ((), ())),
                                        preferred_element_type=f32)  # (n, n)
            adj_stack = adj_f
        else:
            # stacked layout: row h*n + i  <->  (head h, node i)
            dst_rep = jnp.dot(p_rep, dst, preferred_element_type=f32)   # (Hn, H)
            dst_stack = jnp.sum(dst_rep * headmask, axis=1, keepdims=True)
            src_stack = lax.dot_general(headmask, src,
                                        (((1,), (1,)), ((), ())),
                                        preferred_element_type=f32)     # (Hn, n)
            adj_stack = jnp.dot(p_rep, adj_f, preferred_element_type=f32)

        e = dst_stack + src_stack                                  # (Hn, n)
        e = jnp.where(e > 0, e, 0.2 * e)                           # LeakyReLU(0.2)
        keep = adj_stack > 0.5
        e = jnp.where(keep, e, f32(-1e30))
        e_max = jnp.max(e, axis=-1, keepdims=True)
        p = jnp.where(keep, jnp.exp(e - e_max), 0.0)
        denom = jnp.sum(p, axis=-1, keepdims=True)                 # >= 1 (self loop)
        alpha = p * pl.reciprocal(denom, approx=True)              # EUP slot

        out_stack = jnp.dot(alpha, hp, preferred_element_type=f32)  # (Hn, hc)
        if nheads == 1:
            out = out_stack
        else:
            # pick the diagonal head blocks with static selector matrices
            out = jnp.dot(p_pick, out_stack * blkmask,
                          preferred_element_type=f32)               # (n, hc)
        return out + bias

    def kernel(data_ref, par_ref, out_ref):
        # ---- unpack packed operands (static slices; one DMA per slab) ------
        x_m = data_ref[do["x_m"]:do["x_m"] + n_m, 0:f_m]
        x_p = data_ref[do["x_p"]:do["x_p"] + n_p, 0:f_p]
        eidx = data_ref[do["eidx"]:do["eidx"] + 2, :].astype(jnp.int32)  # (2,128)
        prov = eidx[0:1, :]                           # provider idx (pad = -1)
        memb = eidx[1:2, :]                           # member   idx (pad = -1)

        # ---- one-hot edge selectors + provider adjacency -------------------
        iota_p = lax.broadcasted_iota(jnp.int32, (n_p, LANES), 0)
        iota_m = lax.broadcasted_iota(jnp.int32, (n_m, LANES), 0)
        oh_p_prov = (iota_p == prov).astype(f32)      # (n_p, 128) dst one-hot
        oh_p_memb = (iota_p == memb).astype(f32)      # src; OOB / pad lanes -> 0
        oh_m_memb = (iota_m == memb).astype(f32)      # (n_m, 128) edge-logit gather

        cnt_p = lax.dot_general(oh_p_prov, oh_p_memb, (((1,), (1,)), ((), ())),
                                preferred_element_type=f32)          # (n_p, n_p)
        eye_p = (lax.broadcasted_iota(jnp.int32, (n_p, n_p), 0)
                 == lax.broadcasted_iota(jnp.int32, (n_p, n_p), 1))
        adj_p = jnp.where(jnp.logical_or(eye_p, cnt_p > 0.5), 1.0, 0.0)  # f32

        # ---- member branch --------------------------------------------------
        # TODO(synk): all member-graph edge targets are >= n_m in the reference
        # (out of range); dropping them leaves only self-loops, so both member
        # GAT layers reduce to per-node linear + bias (alpha == 1).
        w_m1 = par_ref[po["w_m1"]:po["w_m1"] + f_m, 0:hidden]
        b_m1 = par_ref[po["b_m1"]:po["b_m1"] + 1, 0:hidden]
        w_m2 = par_ref[po["w_m2"]:po["w_m2"] + hidden, 0:latent]
        b_m2 = par_ref[po["b_m2"]:po["b_m2"] + 1, 0:latent]
        h_m = _elu(jnp.dot(x_m, w_m1, preferred_element_type=f32) + b_m1)
        z_m = jnp.dot(h_m, w_m2, preferred_element_type=f32) + b_m2   # (n_m, L)

        # ---- provider branch (head-batched dense GAT) -----------------------
        wcat_p1 = par_ref[po["wcat_p1"]:po["wcat_p1"] + f_p, 0:hidden + 2 * heads]
        b_p1 = par_ref[po["b_p1"]:po["b_p1"] + 1, 0:hidden]
        wcat_p2 = par_ref[po["wcat_p2"]:po["wcat_p2"] + hidden, 0:latent + 2]
        b_p2 = par_ref[po["b_p2"]:po["b_p2"] + 1, 0:latent]
        p_rep = par_ref[po["p_rep"]:po["p_rep"] + heads * n_p, 0:n_p]
        headmask = par_ref[po["headmask"]:po["headmask"] + heads * n_p, 0:heads]
        p_pick = par_ref[po["p_pick"]:po["p_pick"] + n_p, 0:heads * n_p]
        blkmask = par_ref[po["blkmask"]:po["blkmask"] + heads * n_p, 0:hidden]

        h_p = _dense_gat(x_p, adj_p, wcat_p1, b_p1, heads, head_dim,
                         p_rep, headmask, p_pick, blkmask)
        h_p = _elu(h_p)                               # dropout == identity (eval)
        z_p = _dense_gat(h_p, adj_p, wcat_p2, b_p2, 1, latent)        # (n_p, L)

        # ---- decoders: 128-lane-wide weights -> lane-dense output rows ------
        dec_m_w = par_ref[po["dec_m_w"]:po["dec_m_w"] + latent, :]
        dec_m_b = par_ref[po["dec_m_b"]:po["dec_m_b"] + 1, :]
        dec_p_w = par_ref[po["dec_p_w"]:po["dec_p_w"] + latent, :]
        dec_p_b = par_ref[po["dec_p_b"]:po["dec_p_b"] + 1, :]
        xhat_m = jnp.dot(z_m, dec_m_w, preferred_element_type=f32) + dec_m_b  # (n_m,128)
        xhat_p = jnp.dot(z_p, dec_p_w, preferred_element_type=f32) + dec_p_b  # (n_p,128)

        # ---- edge logits, gather-free, lane-dense (1, 128) -------------------
        #   logits[e] = (z_p z_m^T)[prov[e], memb[e]]
        zz = lax.dot_general(z_p, z_m, (((1,), (1,)), ((), ())),
                             preferred_element_type=f32)            # (n_p, n_m)
        t = jnp.dot(zz, oh_m_memb, preferred_element_type=f32)      # (n_p, 128)
        elog = jnp.sum(oh_p_prov * t, axis=0, keepdims=True)        # (1, 128)

        # ---- single lane-dense output slab (one writeback DMA) --------------
        out_ref[...] = jnp.zeros((out_rows, LANES), f32)
        out_ref[sec_m:sec_m + n_m, :] = xhat_m
        out_ref[sec_p:sec_p + n_p, :] = xhat_p
        out_ref[sec_e:sec_e + 1, :] = elog

    return kernel


# --------------------------------------------------------------------------
# Wrapper: packs operands into two slabs, single pallas_call, no grid
# --------------------------------------------------------------------------
def gat_autoencoder_forward(params, x_member, x_provider, edge_index, heads):
    n_m, f_m = x_member.shape
    n_p, f_p = x_provider.shape
    n_edges = edge_index.shape[1]
    if n_edges > LANES:
        raise ValueError("edge lanes capped at 128")  # TODO(synk): tile edges
    hidden = params["member_conv1"]["w"].shape[1]
    head_dim = hidden // heads
    latent = params["member_conv2"]["w"].shape[1]

    # ---- fold attention vectors into the weights (trace-time, param only) ---
    def fold(p, nheads, hdim):
        w = p["w"].astype(jnp.float32)                       # (f_in, nheads*hdim)
        w3 = w.reshape(w.shape[0], nheads, hdim)
        wdst = jnp.einsum("fhc,hc->fh", w3, p["att_dst"].astype(jnp.float32))
        wsrc = jnp.einsum("fhc,hc->fh", w3, p["att_src"].astype(jnp.float32))
        return jnp.concatenate([w, wdst, wsrc], axis=1)      # (f_in, H*C + 2H)

    wcat_p1 = fold(params["provider_conv1"], heads, head_dim)
    wcat_p2 = fold(params["provider_conv2"], 1, latent)

    # ---- static head-batching selector matrices (provider conv1) -----------
    eye_np = jnp.eye(n_p, dtype=jnp.float32)
    p_rep = jnp.tile(eye_np, (heads, 1))                         # (H*N_p, N_p)
    headmask = jnp.repeat(jnp.eye(heads, dtype=jnp.float32), n_p, axis=0)
    p_pick = jnp.tile(eye_np, (1, heads))                        # (N_p, H*N_p)
    blkmask = jnp.kron(jnp.eye(heads, dtype=jnp.float32),
                       jnp.ones((n_p, head_dim), jnp.float32))   # (H*N_p, H*C)

    # ---- parameter slab ------------------------------------------------------
    param_pieces = {
        "w_m1": params["member_conv1"]["w"],
        "b_m1": params["member_conv1"]["bias"].reshape(1, -1),
        "w_m2": params["member_conv2"]["w"],
        "b_m2": params["member_conv2"]["bias"].reshape(1, -1),
        "dec_m_w": params["member_decoder"]["w"],
        "dec_m_b": params["member_decoder"]["b"].reshape(1, -1),
        "wcat_p1": wcat_p1,
        "b_p1": params["provider_conv1"]["bias"].reshape(1, -1),
        "wcat_p2": wcat_p2,
        "b_p2": params["provider_conv2"]["bias"].reshape(1, -1),
        "dec_p_w": params["provider_decoder"]["w"],
        "dec_p_b": params["provider_decoder"]["b"].reshape(1, -1),
        "p_rep": p_rep,
        "headmask": headmask,
        "p_pick": p_pick,
        "blkmask": blkmask,
    }
    param_slab, offs = _pack_slab(list(param_pieces.values()))
    param_offsets = dict(zip(param_pieces.keys(), offs))

    # ---- data slab -----------------------------------------------------------
    e_rows = jnp.full((2, LANES), -1.0, jnp.float32)
    e_rows = e_rows.at[:, :n_edges].set(edge_index.astype(jnp.float32))
    data_pieces = {"x_m": x_member, "x_p": x_provider, "eidx": e_rows}
    data_slab, doffs = _pack_slab(list(data_pieces.values()))
    data_offsets = dict(zip(data_pieces.keys(), doffs))

    # ---- lane-dense output slab layout --------------------------------------
    sec_m = 0
    sec_p = _ceil8(n_m)
    sec_e = sec_p + _ceil8(n_p)
    out_rows = sec_e + 8

    kernel = make_kernel(dict(
        n_m=n_m, n_p=n_p, f_m=f_m, f_p=f_p, hidden=hidden, latent=latent,
        heads=heads, head_dim=head_dim,
        param_offsets=param_offsets, data_offsets=data_offsets,
        out_sections=(sec_m, sec_p, sec_e)))

    out = pl.pallas_call(
        kernel,
        out_shape=jax.ShapeDtypeStruct((out_rows, LANES), jnp.float32),
        in_specs=[pl.BlockSpec(memory_space=pltpu.MemorySpace.VMEM),
                  pl.BlockSpec(memory_space=pltpu.MemorySpace.VMEM)],
        out_specs=pl.BlockSpec(memory_space=pltpu.MemorySpace.VMEM),
    )(data_slab, param_slab)

    x_hat_member = out[sec_m:sec_m + n_m, 0:f_m]
    x_hat_provider = out[sec_p:sec_p + n_p, 0:f_p]
    edge_logits = out[sec_e, 0:n_edges]
    return x_hat_member, x_hat_provider, edge_logits


# --------------------------------------------------------------------------
# Deterministic parameter init (shapes from the module __init__)
# --------------------------------------------------------------------------
def init_gat(key, f_in, heads, head_dim):
    k1, k2, k3 = jax.random.split(key, 3)
    scale = 1.0 / (f_in ** 0.5)
    return dict(
        w=jax.random.normal(k1, (f_in, heads * head_dim), jnp.float32) * scale,
        att_src=jax.random.normal(k2, (heads, head_dim), jnp.float32) * 0.1,
        att_dst=jax.random.normal(k3, (heads, head_dim), jnp.float32) * 0.1,
        bias=jnp.zeros((heads * head_dim,), jnp.float32),
    )


def init_linear(key, d_in, d_out):
    k1, k2 = jax.random.split(key, 2)
    scale = 1.0 / (d_in ** 0.5)
    return dict(
        w=jax.random.normal(k1, (d_in, d_out), jnp.float32) * scale,
        b=jax.random.normal(k2, (d_out,), jnp.float32) * 0.01,
    )


# --------------------------------------------------------------------------
if __name__ == "__main__":
    # problem sizes
    N_MEMBER, N_PROVIDER = 12, 10
    IN_DIM_MEMBER, IN_DIM_PROVIDER = 8, 6
    HIDDEN_DIM, LATENT_DIM, HEADS = 32, 16, 4
    NUM_EDGES = 16

    key = jax.random.PRNGKey(0)
    ks = jax.random.split(key, 12)

    x_member = jax.random.normal(ks[0], (N_MEMBER, IN_DIM_MEMBER), jnp.float32)
    x_provider = jax.random.normal(ks[1], (N_PROVIDER, IN_DIM_PROVIDER), jnp.float32)
    prov_idx = jax.random.randint(ks[2], (NUM_EDGES,), 0, N_PROVIDER)
    memb_idx = jax.random.randint(ks[3], (NUM_EDGES,), 0, N_MEMBER)
    edge_index = jnp.stack([prov_idx, memb_idx], axis=0)   # (2, E): provider->member

    params = dict(
        member_conv1=init_gat(ks[4], IN_DIM_MEMBER, HEADS, HIDDEN_DIM // HEADS),
        provider_conv1=init_gat(ks[5], IN_DIM_PROVIDER, HEADS, HIDDEN_DIM // HEADS),
        member_conv2=init_gat(ks[6], HIDDEN_DIM, 1, LATENT_DIM),
        provider_conv2=init_gat(ks[7], HIDDEN_DIM, 1, LATENT_DIM),
        member_decoder=init_linear(ks[8], LATENT_DIM, IN_DIM_MEMBER),
        provider_decoder=init_linear(ks[9], LATENT_DIM, IN_DIM_PROVIDER),
    )

    fwd = jax.jit(functools.partial(gat_autoencoder_forward, heads=HEADS))
    x_hat_member, x_hat_provider, edge_logits = fwd(
        params, x_member, x_provider, edge_index)

    jax.block_until_ready((x_hat_member, x_hat_provider, edge_logits))

    assert x_hat_member.shape == (N_MEMBER, IN_DIM_MEMBER)
    assert x_hat_provider.shape == (N_PROVIDER, IN_DIM_PROVIDER)
    assert edge_logits.shape == (NUM_EDGES,)
    assert bool(jnp.all(jnp.isfinite(x_hat_member)))
    assert bool(jnp.all(jnp.isfinite(x_hat_provider)))
    assert bool(jnp.all(jnp.isfinite(edge_logits)))

    print("KERNEL_OK")
</pallas_src>

<mosaic_0001>
module attributes {stable_mosaic.version = 11 : i64} {
  func.func @kernel(%arg0: memref<40x128xf32, #tpu.memory_space<vmem>>, %arg1: memref<296x128xf32, #tpu.memory_space<vmem>>, %arg2: memref<40x128xf32, #tpu.memory_space<vmem>>) attributes {dimension_semantics = [], scalar_prefetch = 0 : i64, scratch_operands = 0 : i64, tpu.core_type = #tpu.core_type<tc>} {
    %c0 = arith.constant 0 : index
    %c0_0 = arith.constant 0 : index
    %0 = vector.load %arg0[%c0, %c0_0] : memref<40x128xf32, #tpu.memory_space<vmem>>, vector<12x8xf32>
    %c16 = arith.constant 16 : index
    %c0_1 = arith.constant 0 : index
    %1 = vector.load %arg0[%c16, %c0_1] : memref<40x128xf32, #tpu.memory_space<vmem>>, vector<10x6xf32>
    %c32 = arith.constant 32 : index
    %c0_2 = arith.constant 0 : index
    %2 = vector.load %arg0[%c32, %c0_2] : memref<40x128xf32, #tpu.memory_space<vmem>>, vector<2x128xf32>
    %3 = arith.fptosi %2 : vector<2x128xf32> to vector<2x128xi32>
    %4 = vector.extract_strided_slice %3 {offsets = [0, 0], sizes = [1, 128], strides = [1, 1]} : vector<2x128xi32> to vector<1x128xi32>
    %5 = vector.extract_strided_slice %3 {offsets = [1, 0], sizes = [1, 128], strides = [1, 1]} : vector<2x128xi32> to vector<1x128xi32>
    %6 = tpu.iota {dimensions = array<i32: 0>} : vector<10x128xi32>
    %7 = tpu.iota {dimensions = array<i32: 0>} : vector<12x128xi32>
    %8 = vector.broadcast %4 : vector<1x128xi32> to vector<10x128xi32>
    %9 = arith.cmpi eq, %6, %8 : vector<10x128xi32>
    %10 = arith.extui %9 : vector<10x128xi1> to vector<10x128xi32>
    %11 = arith.sitofp %10 : vector<10x128xi32> to vector<10x128xf32>
    %12 = vector.broadcast %5 : vector<1x128xi32> to vector<10x128xi32>
    %13 = arith.cmpi eq, %6, %12 : vector<10x128xi32>
    %14 = arith.extui %13 : vector<10x128xi1> to vector<10x128xi32>
    %15 = arith.sitofp %14 : vector<10x128xi32> to vector<10x128xf32>
    %16 = vector.broadcast %5 : vector<1x128xi32> to vector<12x128xi32>
    %17 = arith.cmpi eq, %7, %16 : vector<12x128xi32>
    %18 = arith.extui %17 : vector<12x128xi1> to vector<12x128xi32>
    %19 = arith.sitofp %18 : vector<12x128xi32> to vector<12x128xf32>
    %cst = arith.constant dense<0.000000e+00> : vector<10x10xf32>
    %20 = tpu.matmul %11, %15, %cst {dimension_numbers = #tpu.dot_dimension_numbers<[1], [1], [0], [0], [0, 0, 1, 0], [], []>} : vector<10x128xf32>, vector<10x128xf32>, vector<10x10xf32> -> vector<10x10xf32>
    %21 = tpu.iota {dimensions = array<i32: 0>} : vector<10x10xi32>
    %22 = tpu.iota {dimensions = array<i32: 1>} : vector<10x10xi32>
    %23 = arith.cmpi eq, %21, %22 : vector<10x10xi32>
    %cst_3 = arith.constant 5.000000e-01 : f32
    %24 = vector.broadcast %cst_3 : f32 to vector<10x10xf32>
    %25 = arith.cmpf ogt, %20, %24 : vector<10x10xf32>
    %26 = arith.ori %23, %25 : vector<10x10xi1>
    %cst_4 = arith.constant 1.000000e+00 : f32
    %cst_5 = arith.constant 0.000000e+00 : f32
    %27 = vector.broadcast %cst_4 : f32 to vector<10x10xf32>
    %28 = vector.broadcast %cst_5 : f32 to vector<10x10xf32>
    %29 = arith.select %26, %27, %28 : vector<10x10xi1>, vector<10x10xf32>
    %c0_6 = arith.constant 0 : index
    %c0_7 = arith.constant 0 : index
    %30 = vector.load %arg1[%c0_6, %c0_7] : memref<296x128xf32, #tpu.memory_space<vmem>>, vector<8x32xf32>
    %c8 = arith.constant 8 : index
    %c0_8 = arith.constant 0 : index
    %31 = vector.load %arg1[%c8, %c0_8] : memref<296x128xf32, #tpu.memory_space<vmem>>, vector<1x32xf32>
    %c16_9 = arith.constant 16 : index
    %c0_10 = arith.constant 0 : index
    %32 = vector.load %arg1[%c16_9, %c0_10] : memref<296x128xf32, #tpu.memory_space<vmem>>, vector<32x16xf32>
    %c48 = arith.constant 48 : index
    %c0_11 = arith.constant 0 : index
    %33 = vector.load %arg1[%c48, %c0_11] : memref<296x128xf32, #tpu.memory_space<vmem>>, vector<1x16xf32>
    %cst_12 = arith.constant dense<0.000000e+00> : vector<12x32xf32>
    %34 = tpu.matmul %0, %30, %cst_12 {dimension_numbers = #tpu.dot_dimension_numbers<[1], [0], [0], [1], [0, 0, 1, 1], [], []>} : vector<12x8xf32>, vector<8x32xf32>, vector<12x32xf32> -> vector<12x32xf32>
    %35 = vector.broadcast %31 : vector<1x32xf32> to vector<12x32xf32>
    %36 = arith.addf %34, %35 : vector<12x32xf32>
    %cst_13 = arith.constant 0.000000e+00 : f32
    %37 = vector.broadcast %cst_13 : f32 to vector<12x32xf32>
    %38 = arith.cmpf ogt, %36, %37 : vector<12x32xf32>
    %cst_14 = arith.constant 0.000000e+00 : f32
    %39 = vector.broadcast %cst_14 : f32 to vector<12x32xf32>
    %40 = arith.minimumf %36, %39 : vector<12x32xf32>
    %41 = math.exp %40 : vector<12x32xf32>
    %cst_15 = arith.constant 1.000000e+00 : f32
    %42 = vector.broadcast %cst_15 : f32 to vector<12x32xf32>
    %43 = arith.subf %41, %42 : vector<12x32xf32>
    %44 = arith.select %38, %36, %43 : vector<12x32xi1>, vector<12x32xf32>
    %cst_16 = arith.constant dense<0.000000e+00> : vector<12x16xf32>
    %45 = tpu.matmul %44, %32, %cst_16 {dimension_numbers = #tpu.dot_dimension_numbers<[1], [0], [0], [1], [0, 0, 1, 1], [], []>} : vector<12x32xf32>, vector<32x16xf32>, vector<12x16xf32> -> vector<12x16xf32>
    %46 = vector.broadcast %33 : vector<1x16xf32> to vector<12x16xf32>
    %47 = arith.addf %45, %46 : vector<12x16xf32>
    %c80 = arith.constant 80 : index
    %c0_17 = arith.constant 0 : index
    %48 = vector.load %arg1[%c80, %c0_17] : memref<296x128xf32, #tpu.memory_space<vmem>>, vector<6x40xf32>
    %c88 = arith.constant 88 : index
    %c0_18 = arith.constant 0 : index
    %49 = vector.load %arg1[%c88, %c0_18] : memref<296x128xf32, #tpu.memory_space<vmem>>, vector<1x32xf32>
    %c96 = arith.constant 96 : index
    %c0_19 = arith.constant 0 : index
    %50 = vector.load %arg1[%c96, %c0_19] : memref<296x128xf32, #tpu.memory_space<vmem>>, vector<32x18xf32>
    %c128 = arith.constant 128 : index
    %c0_20 = arith.constant 0 : index
    %51 = vector.load %arg1[%c128, %c0_20] : memref<296x128xf32, #tpu.memory_space<vmem>>, vector<1x16xf32>
    %c160 = arith.constant 160 : index
    %c0_21 = arith.constant 0 : index
    %52 = vector.load %arg1[%c160, %c0_21] : memref<296x128xf32, #tpu.memory_space<vmem>>, vector<40x10xf32>
    %c200 = arith.constant 200 : index
    %c0_22 = arith.constant 0 : index
    %53 = vector.load %arg1[%c200, %c0_22] : memref<296x128xf32, #tpu.memory_space<vmem>>, vector<40x4xf32>
    %c240 = arith.constant 240 : index
    %c0_23 = arith.constant 0 : index
    %54 = vector.load %arg1[%c240, %c0_23] : memref<296x128xf32, #tpu.memory_space<vmem>>, vector<10x40xf32>
    %c256 = arith.constant 256 : index
    %c0_24 = arith.constant 0 : index
    %55 = vector.load %arg1[%c256, %c0_24] : memref<296x128xf32, #tpu.memory_space<vmem>>, vector<40x32xf32>
    %cst_25 = arith.constant dense<0.000000e+00> : vector<10x40xf32>
    %56 = tpu.matmul %1, %48, %cst_25 {dimension_numbers = #tpu.dot_dimension_numbers<[1], [0], [0], [1], [0, 0, 1, 1], [], []>} : vector<10x6xf32>, vector<6x40xf32>, vector<10x40xf32> -> vector<10x40xf32>
    %57 = vector.extract_strided_slice %56 {offsets = [0, 0], sizes = [10, 32], strides = [1, 1]} : vector<10x40xf32> to vector<10x32xf32>
    %58 = vector.extract_strided_slice %56 {offsets = [0, 32], sizes = [10, 4], strides = [1, 1]} : vector<10x40xf32> to vector<10x4xf32>
    %59 = vector.extract_strided_slice %56 {offsets = [0, 36], sizes = [10, 4], strides = [1, 1]} : vector<10x40xf32> to vector<10x4xf32>
    %cst_26 = arith.constant dense<0.000000e+00> : vector<40x4xf32>
    %60 = tpu.matmul %52, %58, %cst_26 {dimension_numbers = #tpu.dot_dimension_numbers<[1], [0], [0], [1], [0, 0, 1, 1], [], []>} : vector<40x10xf32>, vector<10x4xf32>, vector<40x4xf32> -> vector<40x4xf32>
    %61 = arith.mulf %60, %53 : vector<40x4xf32>
    %cst_27 = arith.constant dense<0.000000e+00> : vector<40xf32>
    %62 = vector.multi_reduction <add>, %61, %cst_27 [1] : vector<40x4xf32> to vector<40xf32>
    %63 = vector.shape_cast %62 : vector<40xf32> to vector<40x1xf32>
    %cst_28 = arith.constant dense<0.000000e+00> : vector<40x10xf32>
    %64 = tpu.matmul %53, %59, %cst_28 {dimension_numbers = #tpu.dot_dimension_numbers<[1], [1], [0], [0], [0, 0, 1, 0], [], []>} : vector<40x4xf32>, vector<10x4xf32>, vector<40x10xf32> -> vector<40x10xf32>
    %cst_29 = arith.constant dense<0.000000e+00> : vector<40x10xf32>
    %65 = tpu.matmul %52, %29, %cst_29 {dimension_numbers = #tpu.dot_dimension_numbers<[1], [0], [0], [1], [0, 0, 1, 1], [], []>} : vector<40x10xf32>, vector<10x10xf32>, vector<40x10xf32> -> vector<40x10xf32>
    %66 = vector.broadcast %63 : vector<40x1xf32> to vector<40x10xf32>
    %67 = arith.addf %66, %64 : vector<40x10xf32>
    %cst_30 = arith.constant 0.000000e+00 : f32
    %68 = vector.broadcast %cst_30 : f32 to vector<40x10xf32>
    %69 = arith.cmpf ogt, %67, %68 : vector<40x10xf32>
    %cst_31 = arith.constant 2.000000e-01 : f32
    %70 = vector.broadcast %cst_31 : f32 to vector<40x10xf32>
    %71 = arith.mulf %70, %67 : vector<40x10xf32>
    %72 = arith.select %69, %67, %71 : vector<40x10xi1>, vector<40x10xf32>
    %cst_32 = arith.constant 5.000000e-01 : f32
    %73 = vector.broadcast %cst_32 : f32 to vector<40x10xf32>
    %74 = arith.cmpf ogt, %65, %73 : vector<40x10xf32>
    %cst_33 = arith.constant -1.000000e+30 : f32
    %75 = vector.broadcast %cst_33 : f32 to vector<40x10xf32>
    %76 = arith.select %74, %72, %75 : vector<40x10xi1>, vector<40x10xf32>
    %cst_34 = arith.constant dense<0xFF800000> : vector<40xf32>
    %77 = vector.multi_reduction <maximumf>, %76, %cst_34 [1] : vector<40x10xf32> to vector<40xf32>
    %78 = vector.shape_cast %77 : vector<40xf32> to vector<40x1xf32>
    %79 = vector.broadcast %78 : vector<40x1xf32> to vector<40x10xf32>
    %80 = arith.subf %76, %79 : vector<40x10xf32>
    %81 = math.exp %80 : vector<40x10xf32>
    %cst_35 = arith.constant 0.000000e+00 : f32
    %82 = vector.broadcast %cst_35 : f32 to vector<40x10xf32>
    %83 = arith.select %74, %81, %82 : vector<40x10xi1>, vector<40x10xf32>
    %cst_36 = arith.constant dense<0.000000e+00> : vector<40xf32>
    %84 = vector.multi_reduction <add>, %83, %cst_36 [1] : vector<40x10xf32> to vector<40xf32>
    %85 = vector.shape_cast %84 : vector<40xf32> to vector<40x1xf32>
    %86 = tpu.reciprocal %85 {approx = true} : vector<40x1xf32> -> vector<40x1xf32>
    %87 = vector.broadcast %86 : vector<40x1xf32> to vector<40x10xf32>
    %88 = arith.mulf %83, %87 : vector<40x10xf32>
    %cst_37 = arith.constant dense<0.000000e+00> : vector<40x32xf32>
    %89 = tpu.matmul %88, %57, %cst_37 {dimension_numbers = #tpu.dot_dimension_numbers<[1], [0], [0], [1], [0, 0, 1, 1], [], []>} : vector<40x10xf32>, vector<10x32xf32>, vector<40x32xf32> -> vector<40x32xf32>
    %90 = arith.mulf %89, %55 : vector<40x32xf32>
    %cst_38 = arith.constant dense<0.000000e+00> : vector<10x32xf32>
    %91 = tpu.matmul %54, %90, %cst_38 {dimension_numbers = #tpu.dot_dimension_numbers<[1], [0], [0], [1], [0, 0, 1, 1], [], []>} : vector<10x40xf32>, vector<40x32xf32>, vector<10x32xf32> -> vector<10x32xf32>
    %92 = vector.broadcast %49 : vector<1x32xf32> to vector<10x32xf32>
    %93 = arith.addf %91, %92 : vector<10x32xf32>
    %cst_39 = arith.constant 0.000000e+00 : f32
    %94 = vector.broadcast %cst_39 : f32 to vector<10x32xf32>
    %95 = arith.cmpf ogt, %93, %94 : vector<10x32xf32>
    %cst_40 = arith.constant 0.000000e+00 : f32
    %96 = vector.broadcast %cst_40 : f32 to vector<10x32xf32>
    %97 = arith.minimumf %93, %96 : vector<10x32xf32>
    %98 = math.exp %97 : vector<10x32xf32>
    %cst_41 = arith.constant 1.000000e+00 : f32
    %99 = vector.broadcast %cst_41 : f32 to vector<10x32xf32>
    %100 = arith.subf %98, %99 : vector<10x32xf32>
    %101 = arith.select %95, %93, %100 : vector<10x32xi1>, vector<10x32xf32>
    %cst_42 = arith.constant dense<0.000000e+00> : vector<10x18xf32>
    %102 = tpu.matmul %101, %50, %cst_42 {dimension_numbers = #tpu.dot_dimension_numbers<[1], [0], [0], [1], [0, 0, 1, 1], [], []>} : vector<10x32xf32>, vector<32x18xf32>, vector<10x18xf32> -> vector<10x18xf32>
    %103 = vector.extract_strided_slice %102 {offsets = [0, 0], sizes = [10, 16], strides = [1, 1]} : vector<10x18xf32> to vector<10x16xf32>
    %104 = vector.extract_strided_slice %102 {offsets = [0, 16], sizes = [10, 1], strides = [1, 1]} : vector<10x18xf32> to vector<10x1xf32>
    %105 = vector.extract_strided_slice %102 {offsets = [0, 17], sizes = [10, 1], strides = [1, 1]} : vector<10x18xf32> to vector<10x1xf32>
    %cst_43 = arith.constant 1.000000e+00 : f32
    %106 = vector.broadcast %cst_43 : f32 to vector<10x1xf32>
    %cst_44 = arith.constant dense<0.000000e+00> : vector<10x10xf32>
    %107 = tpu.matmul %106, %105, %cst_44 {dimension_numbers = #tpu.dot_dimension_numbers<[1], [1], [0], [0], [0, 0, 1, 0], [], []>} : vector<10x1xf32>, vector<10x1xf32>, vector<10x10xf32> -> vector<10x10xf32>
    %108 = vector.broadcast %104 : vector<10x1xf32> to vector<10x10xf32>
    %109 = arith.addf %108, %107 : vector<10x10xf32>
    %cst_45 = arith.constant 0.000000e+00 : f32
    %110 = vector.broadcast %cst_45 : f32 to vector<10x10xf32>
    %111 = arith.cmpf ogt, %109, %110 : vector<10x10xf32>
    %cst_46 = arith.constant 2.000000e-01 : f32
    %112 = vector.broadcast %cst_46 : f32 to vector<10x10xf32>
    %113 = arith.mulf %112, %109 : vector<10x10xf32>
    %114 = arith.select %111, %109, %113 : vector<10x10xi1>, vector<10x10xf32>
    %cst_47 = arith.constant 5.000000e-01 : f32
    %115 = vector.broadcast %cst_47 : f32 to vector<10x10xf32>
    %116 = arith.cmpf ogt, %29, %115 : vector<10x10xf32>
    %cst_48 = arith.constant -1.000000e+30 : f32
    %117 = vector.broadcast %cst_48 : f32 to vector<10x10xf32>
    %118 = arith.select %116, %114, %117 : vector<10x10xi1>, vector<10x10xf32>
    %cst_49 = arith.constant dense<0xFF800000> : vector<10xf32>
    %119 = vector.multi_reduction <maximumf>, %118, %cst_49 [1] : vector<10x10xf32> to vector<10xf32>
    %120 = vector.shape_cast %119 : vector<10xf32> to vector<10x1xf32>
    %121 = vector.broadcast %120 : vector<10x1xf32> to vector<10x10xf32>
    %122 = arith.subf %118, %121 : vector<10x10xf32>
    %123 = math.exp %122 : vector<10x10xf32>
    %cst_50 = arith.constant 0.000000e+00 : f32
    %124 = vector.broadcast %cst_50 : f32 to vector<10x10xf32>
    %125 = arith.select %116, %123, %124 : vector<10x10xi1>, vector<10x10xf32>
    %cst_51 = arith.constant dense<0.000000e+00> : vector<10xf32>
    %126 = vector.multi_reduction <add>, %125, %cst_51 [1] : vector<10x10xf32> to vector<10xf32>
    %127 = vector.shape_cast %126 : vector<10xf32> to vector<10x1xf32>
    %128 = tpu.reciprocal %127 {approx = true} : vector<10x1xf32> -> vector<10x1xf32>
    %129 = vector.broadcast %128 : vector<10x1xf32> to vector<10x10xf32>
    %130 = arith.mulf %125, %129 : vector<10x10xf32>
    %cst_52 = arith.constant dense<0.000000e+00> : vector<10x16xf32>
    %131 = tpu.matmul %130, %103, %cst_52 {dimension_numbers = #tpu.dot_dimension_numbers<[1], [0], [0], [1], [0, 0, 1, 1], [], []>} : vector<10x10xf32>, vector<10x16xf32>, vector<10x16xf32> -> vector<10x16xf32>
    %132 = vector.broadcast %51 : vector<1x16xf32> to vector<10x16xf32>
    %133 = arith.addf %131, %132 : vector<10x16xf32>
    %c56 = arith.constant 56 : index
    %c0_53 = arith.constant 0 : index
    %134 = vector.load %arg1[%c56, %c0_53] : memref<296x128xf32, #tpu.memory_space<vmem>>, vector<16x128xf32>
    %c72 = arith.constant 72 : index
    %c0_54 = arith.constant 0 : index
    %135 = vector.load %arg1[%c72, %c0_54] : memref<296x128xf32, #tpu.memory_space<vmem>>, vector<1x128xf32>
    %c136 = arith.constant 136 : index
    %c0_55 = arith.constant 0 : index
    %136 = vector.load %arg1[%c136, %c0_55] : memref<296x128xf32, #tpu.memory_space<vmem>>, vector<16x128xf32>
    %c152 = arith.constant 152 : index
    %c0_56 = arith.constant 0 : index
    %137 = vector.load %arg1[%c152, %c0_56] : memref<296x128xf32, #tpu.memory_space<vmem>>, vector<1x128xf32>
    %cst_57 = arith.constant dense<0.000000e+00> : vector<12x128xf32>
    %138 = tpu.matmul %47, %134, %cst_57 {dimension_numbers = #tpu.dot_dimension_numbers<[1], [0], [0], [1], [0, 0, 1, 1], [], []>} : vector<12x16xf32>, vector<16x128xf32>, vector<12x128xf32> -> vector<12x128xf32>
    %139 = vector.broadcast %135 : vector<1x128xf32> to vector<12x128xf32>
    %140 = arith.addf %138, %139 : vector<12x128xf32>
    %cst_58 = arith.constant dense<0.000000e+00> : vector<10x128xf32>
    %141 = tpu.matmul %133, %136, %cst_58 {dimension_numbers = #tpu.dot_dimension_numbers<[1], [0], [0], [1], [0, 0, 1, 1], [], []>} : vector<10x16xf32>, vector<16x128xf32>, vector<10x128xf32> -> vector<10x128xf32>
    %142 = vector.broadcast %137 : vector<1x128xf32> to vector<10x128xf32>
    %143 = arith.addf %141, %142 : vector<10x128xf32>
    %cst_59 = arith.constant dense<0.000000e+00> : vector<10x12xf32>
    %144 = tpu.matmul %133, %47, %cst_59 {dimension_numbers = #tpu.dot_dimension_numbers<[1], [1], [0], [0], [0, 0, 1, 0], [], []>} : vector<10x16xf32>, vector<12x16xf32>, vector<10x12xf32> -> vector<10x12xf32>
    %cst_60 = arith.constant dense<0.000000e+00> : vector<10x128xf32>
    %145 = tpu.matmul %144, %19, %cst_60 {dimension_numbers = #tpu.dot_dimension_numbers<[1], [0], [0], [1], [0, 0, 1, 1], [], []>} : vector<10x12xf32>, vector<12x128xf32>, vector<10x128xf32> -> vector<10x128xf32>
    %146 = arith.mulf %11, %145 : vector<10x128xf32>
    %cst_61 = arith.constant dense<0.000000e+00> : vector<128xf32>
    %147 = vector.multi_reduction <add>, %146, %cst_61 [0] : vector<10x128xf32> to vector<128xf32>
    %148 = vector.shape_cast %147 : vector<128xf32> to vector<1x128xf32>
    %cst_62 = arith.constant 0.000000e+00 : f32
    %149 = vector.broadcast %cst_62 : f32 to vector<40x128xf32>
    %c0_63 = arith.constant 0 : index
    %c0_64 = arith.constant 0 : index
    %150 = vector.load %arg2[%c0_63, %c0_64] : memref<40x128xf32, #tpu.memory_space<vmem>>, vector<40x128xf32>
    tpu.vector_store %arg2[%c0_63, %c0_64], %149 {strides = array<i32>} : memref<40x128xf32, #tpu.memory_space<vmem>>, vector<40x128xf32>,
    %c0_65 = arith.constant 0 : index
    %c0_66 = arith.constant 0 : index
    %151 = vector.load %arg2[%c0_65, %c0_66] : memref<40x128xf32, #tpu.memory_space<vmem>>, vector<12x128xf32>
    tpu.vector_store %arg2[%c0_65, %c0_66], %140 {strides = array<i32>} : memref<40x128xf32, #tpu.memory_space<vmem>>, vector<12x128xf32>,
    %c16_67 = arith.constant 16 : index
    %c0_68 = arith.constant 0 : index
    %152 = vector.load %arg2[%c16_67, %c0_68] : memref<40x128xf32, #tpu.memory_space<vmem>>, vector<10x128xf32>
    tpu.vector_store %arg2[%c16_67, %c0_68], %143 {strides = array<i32>} : memref<40x128xf32, #tpu.memory_space<vmem>>, vector<10x128xf32>,
    %c32_69 = arith.constant 32 : index
    %c0_70 = arith.constant 0 : index
    %153 = vector.load %arg2[%c32_69, %c0_70] : memref<40x128xf32, #tpu.memory_space<vmem>>, vector<1x128xf32>
    tpu.vector_store %arg2[%c32_69, %c0_70], %148 {strides = array<i32>} : memref<40x128xf32, #tpu.memory_space<vmem>>, vector<1x128xf32>,
    return
  }
}

</mosaic_0001>

<llo_original>
// kernel: tile.14
$region0: #{tile.14}
  %s0 = inlined_call_operand.vmem [shape: f32[4,10,10], index: 0, kind: input, shape index: {}]
  %s1 = inlined_call_operand.vmem [shape: f32[40,10], index: 1, kind: output, shape index: {}]
  $region1: #{tile.14} parent=0
    #allocation0 [shape = 'u8[40960]{0}', space=vmem, size = 0xa000, scoped, tag = 'scoped mem for input reshape']
    %s3 = ssub.s32 16, 1
    %s4 = scalar_lea.vmem %s0, 36
    %v5 = vld [vmem:[%s4] sm:%s3]
    %s6 = scalar_lea.vmem [#allocation0], 72
    %7 = vst [vmem:[%s6] sm:%s3] %v5
    %s8 = scalar_lea.vmem %s0, 32
    %v9 = vld [vmem:[%s8] sm:%s3]
    %s10 = scalar_lea.vmem [#allocation0], 64
    %11 = vst [vmem:[%s10] sm:%s3] %v9
    %s12 = scalar_lea.vmem %s0, 28
    %v13 = vld [vmem:[%s12] sm:%s3]
    %s14 = scalar_lea.vmem [#allocation0], 56
    %15 = vst [vmem:[%s14] sm:%s3] %v13
    %s16 = scalar_lea.vmem %s0, 24
    %v17 = vld [vmem:[%s16] sm:%s3]
    %s18 = scalar_lea.vmem [#allocation0], 48
    %19 = vst [vmem:[%s18] sm:%s3] %v17
    %s20 = scalar_lea.vmem %s0, 20
    %v21 = vld [vmem:[%s20] sm:%s3]
    %s22 = scalar_lea.vmem [#allocation0], 40
    %23 = vst [vmem:[%s22] sm:%s3] %v21
    %s24 = scalar_lea.vmem %s0, 16
    %v25 = vld [vmem:[%s24] sm:%s3]
    %s26 = scalar_lea.vmem [#allocation0], 32
    %27 = vst [vmem:[%s26] sm:%s3] %v25
    %s28 = scalar_lea.vmem %s0, 12
    %v29 = vld [vmem:[%s28] sm:%s3]
    %s30 = scalar_lea.vmem [#allocation0], 24
    %31 = vst [vmem:[%s30] sm:%s3] %v29
    %s32 = scalar_lea.vmem %s0, 8
    %v33 = vld [vmem:[%s32] sm:%s3]
    %s34 = scalar_lea.vmem [#allocation0], 16
    %35 = vst [vmem:[%s34] sm:%s3] %v33
    %s36 = scalar_lea.vmem %s0, 4
    %v37 = vld [vmem:[%s36] sm:%s3]
    %s38 = scalar_lea.vmem [#allocation0], 8
    %39 = vst [vmem:[%s38] sm:%s3] %v37
    %v40 = vld [vmem:[%s0] sm:%s3]
    %41 = vst [vmem:[#allocation0] sm:%s3] %v40
    %v42 = vld [vmem:[#allocation0] ss:$8 sm:$0xf]
    %v43 = vld [vmem:[#allocation0] ss:$8 sm:$0xf0]
    %vm44 = vcmask 1047556
    %v45 = vsel %vm44, %v43, %v42
    %vm46 = vcmask 80896
    %47 = vst.msk [vmem:[%s1] sm:$0xff] %vm46, %v45
    %s48 = scalar_lea.vmem [#allocation0], 64
    %s49 = smov 3
    %v50 = vld [vmem:[%s48] ss:$8 sm:%s49]
    %vm51 = vcmask 80896
    %s52 = scalar_lea.vmem %s1, 8
    %53 = vst.msk [vmem:[%s52] sm:$0x3] %vm51, %v50
    %s54 = scalar_lea.vmem [#allocation0], 3
    %v55 = vld [vmem:[%s54] ss:$8 sm:$0xf]
    %s56 = scalar_lea.vmem [#allocation0], 3
    %v57 = vld [vmem:[%s56] ss:$8 sm:$0xf0]
    %vm58 = vcmask 1047556
    %v59 = vsel %vm58, %v57, %v55
    %60 = vrot.lane.b32.xlu0 %v59, 30
    %v61 = vpop.permute.xlu0 %60
    %vm62 = vcmask 326896
    %63 = vst.msk [vmem:[%s1] sm:$0xff] %vm62, %v61
    %s64 = scalar_lea.vmem [#allocation0], 67
    %s65 = smov 3
    %v66 = vld [vmem:[%s64] ss:$8 sm:%s65]
    %67 = vrot.lane.b32.xlu0 %v66, 30
    %v68 = vpop.permute.xlu0 %67
    %vm69 = vcmask 326896
    %s70 = scalar_lea.vmem %s1, 8
    %71 = vst.msk [vmem:[%s70] sm:$0x3] %vm69, %v68
    %s72 = scalar_lea.vmem [#allocation0], 2
    %v73 = vld [vmem:[%s72] ss:$8 sm:$0xf]
    %s74 = scalar_lea.vmem [#allocation0], 2
    %v75 = vld [vmem:[%s74] ss:$8 sm:$0xf0]
    %vm76 = vcmask 1047556
    %v77 = vsel %vm76, %v75, %v73
    %78 = vrot.lane.b32.xlu0 %v77, 20
    %v79 = vpop.permute.xlu0 %78
    %vm80 = vcmask 244896
    %81 = vst.msk [vmem:[%s1] sm:$0xff] %vm80, %v79
    %s82 = scalar_lea.vmem [#allocation0], 66
    %s83 = smov 3
    %v84 = vld [vmem:[%s82] ss:$8 sm:%s83]
    %85 = vrot.lane.b32.xlu0 %v84, 20
    %v86 = vpop.permute.xlu0 %85
    %vm87 = vcmask 244896
    %s88 = scalar_lea.vmem %s1, 8
    %89 = vst.msk [vmem:[%s88] sm:$0x3] %vm87, %v86
    %s90 = scalar_lea.vmem [#allocation0], 1
    %v91 = vld [vmem:[%s90] ss:$8 sm:$0xf]
    %s92 = scalar_lea.vmem [#allocation0], 1
    %v93 = vld [vmem:[%s92] ss:$8 sm:$0xf0]
    %vm94 = vcmask 1047556
    %v95 = vsel %vm94, %v93, %v91
    %96 = vrot.lane.b32.xlu0 %v95, 10
    %v97 = vpop.permute.xlu0 %96
    %vm98 = vcmask 162896
    %99 = vst.msk [vmem:[%s1] sm:$0xff] %vm98, %v97
    %s100 = scalar_lea.vmem [#allocation0], 65
    %s101 = smov 3
    %v102 = vld [vmem:[%s100] ss:$8 sm:%s101]
    %103 = vrot.lane.b32.xlu0 %v102, 10
    %v104 = vpop.permute.xlu0 %103
    %vm105 = vcmask 162896
    %s106 = scalar_lea.vmem %s1, 8
    %107 = vst.msk [vmem:[%s106] sm:$0x3] %vm105, %v104

// kernel: tile.19
$region0: #{tile.19}
  %s0 = inlined_call_operand.vmem [shape: f32[10,4,10], index: 0, kind: input, shape index: {}]
  %s1 = inlined_call_operand.vmem [shape: f32[10,40], index: 1, kind: output, shape index: {}]
  $region1: #{tile.19} parent=0
    #allocation0 [shape = 'u8[40960]{0}', space=vmem, size = 0xa000, scoped, tag = 'scoped mem for input reshape']
    %s3 = ssub.s32 16, 1
    %s4 = scalar_lea.vmem %s0, 36
    %v5 = vld [vmem:[%s4] sm:%s3]
    %s6 = scalar_lea.vmem [#allocation0], 72
    %7 = vst [vmem:[%s6] sm:%s3] %v5
    %s8 = scalar_lea.vmem %s0, 32
    %v9 = vld [vmem:[%s8] sm:%s3]
    %s10 = scalar_lea.vmem [#allocation0], 64
    %11 = vst [vmem:[%s10] sm:%s3] %v9
    %s12 = scalar_lea.vmem %s0, 28
    %v13 = vld [vmem:[%s12] sm:%s3]
    %s14 = scalar_lea.vmem [#allocation0], 56
    %15 = vst [vmem:[%s14] sm:%s3] %v13
    %s16 = scalar_lea.vmem %s0, 24
    %v17 = vld [vmem:[%s16] sm:%s3]
    %s18 = scalar_lea.vmem [#allocation0], 48
    %19 = vst [vmem:[%s18] sm:%s3] %v17
    %s20 = scalar_lea.vmem %s0, 20
    %v21 = vld [vmem:[%s20] sm:%s3]
    %s22 = scalar_lea.vmem [#allocation0], 40
    %23 = vst [vmem:[%s22] sm:%s3] %v21
    %s24 = scalar_lea.vmem %s0, 16
    %v25 = vld [vmem:[%s24] sm:%s3]
    %s26 = scalar_lea.vmem [#allocation0], 32
    %27 = vst [vmem:[%s26] sm:%s3] %v25
    %s28 = scalar_lea.vmem %s0, 12
    %v29 = vld [vmem:[%s28] sm:%s3]
    %s30 = scalar_lea.vmem [#allocation0], 24
    %31 = vst [vmem:[%s30] sm:%s3] %v29
    %s32 = scalar_lea.vmem %s0, 8
    %v33 = vld [vmem:[%s32] sm:%s3]
    %s34 = scalar_lea.vmem [#allocation0], 16
    %35 = vst [vmem:[%s34] sm:%s3] %v33
    %s36 = scalar_lea.vmem %s0, 4
    %v37 = vld [vmem:[%s36] sm:%s3]
    %s38 = scalar_lea.vmem [#allocation0], 8
    %39 = vst [vmem:[%s38] sm:%s3] %v37
    %v40 = vld [vmem:[%s0] sm:%s3]
    %41 = vst [vmem:[#allocation0] sm:%s3] %v40
    %v42 = vld [vmem:[#allocation0] ss:$8 sm:$0xf]
    %v43 = vld [vmem:[#allocation0] ss:$8 sm:$0xf0]
    %vm44 = vcmask 1047556
    %v45 = vsel %vm44, %v43, %v42
    %vm46 = vcmask 80896
    %47 = vst.msk [vmem:[%s1] sm:$0xff] %vm46, %v45
    %s48 = scalar_lea.vmem [#allocation0], 64
    %s49 = smov 3
    %v50 = vld [vmem:[%s48] ss:$8 sm:%s49]
    %vm51 = vcmask 80896
    %s52 = scalar_lea.vmem %s1, 8
    %53 = vst.msk [vmem:[%s52] sm:$0x3] %vm51, %v50
    %s54 = scalar_lea.vmem [#allocation0], 3
    %v55 = vld [vmem:[%s54] ss:$8 sm:$0xf]
    %s56 = scalar_lea.vmem [#allocation0], 3
    %v57 = vld [vmem:[%s56] ss:$8 sm:$0xf0]
    %vm58 = vcmask 1047556
    %v59 = vsel %vm58, %v57, %v55
    %60 = vrot.lane.b32.xlu0 %v59, 30
    %v61 = vpop.permute.xlu0 %60
    %vm62 = vcmask 326896
    %63 = vst.msk [vmem:[%s1] sm:$0xff] %vm62, %v61
    %s64 = scalar_lea.vmem [#allocation0], 67
    %s65 = smov 3
    %v66 = vld [vmem:[%s64] ss:$8 sm:%s65]
    %67 = vrot.lane.b32.xlu0 %v66, 30
    %v68 = vpop.permute.xlu0 %67
    %vm69 = vcmask 326896
    %s70 = scalar_lea.vmem %s1, 8
    %71 = vst.msk [vmem:[%s70] sm:$0x3] %vm69, %v68
    %s72 = scalar_lea.vmem [#allocation0], 2
    %v73 = vld [vmem:[%s72] ss:$8 sm:$0xf]
    %s74 = scalar_lea.vmem [#allocation0], 2
    %v75 = vld [vmem:[%s74] ss:$8 sm:$0xf0]
    %vm76 = vcmask 1047556
    %v77 = vsel %vm76, %v75, %v73
    %78 = vrot.lane.b32.xlu0 %v77, 20
    %v79 = vpop.permute.xlu0 %78
    %vm80 = vcmask 244896
    %81 = vst.msk [vmem:[%s1] sm:$0xff] %vm80, %v79
    %s82 = scalar_lea.vmem [#allocation0], 66
    %s83 = smov 3
    %v84 = vld [vmem:[%s82] ss:$8 sm:%s83]
    %85 = vrot.lane.b32.xlu0 %v84, 20
    %v86 = vpop.permute.xlu0 %85
    %vm87 = vcmask 244896
    %s88 = scalar_lea.vmem %s1, 8
    %89 = vst.msk [vmem:[%s88] sm:$0x3] %vm87, %v86
    %s90 = scalar_lea.vmem [#allocation0], 1
    %v91 = vld [vmem:[%s90] ss:$8 sm:$0xf]
    %s92 = scalar_lea.vmem [#allocation0], 1
    %v93 = vld [vmem:[%s92] ss:$8 sm:$0xf0]
    %vm94 = vcmask 1047556
    %v95 = vsel %vm94, %v93, %v91
    %96 = vrot.lane.b32.xlu0 %v95, 10
    %v97 = vpop.permute.xlu0 %96
    %vm98 = vcmask 162896
    %99 = vst.msk [vmem:[%s1] sm:$0xff] %vm98, %v97
    %s100 = scalar_lea.vmem [#allocation0], 65
    %s101 = smov 3
    %v102 = vld [vmem:[%s100] ss:$8 sm:%s101]
    %103 = vrot.lane.b32.xlu0 %v102, 10
    %v104 = vpop.permute.xlu0 %103
    %vm105 = vcmask 162896
    %s106 = scalar_lea.vmem %s1, 8
    %107 = vst.msk [vmem:[%s106] sm:$0x3] %vm105, %v104

// kernel: gat_autoencoder_forward.1
$region0: #{gat_autoencoder_forward.1}
  #allocation0 [shape = 'u32[]', space=smem, size = 0x4, offset = 0x4, fixed_abs, tag = 'smem constant byte address 0x4 - core index']
  #allocation1 [shape = 'u32[72,128]{1,0:T(1,128)}', space=vmem, size = 0x9000, scoped, tag = 'internal scratch']
  %s0 = inlined_call_operand.vmem [shape: f32[40,128], index: 0, kind: input, shape index: {}]
  %s1 = inlined_call_operand.vmem [shape: f32[296,128], index: 1, kind: input, shape index: {}]
  %s2 = inlined_call_operand.vmem [shape: f32[40,128], index: 2, kind: output, shape index: {}]
  %s3 = sld [smem:[#allocation0]]
  $region18: #{gat_autoencoder_forward.1} parent=0
    _
  %s5 = ssub.s32 1, %s3
  %s6 = scalar_select 0, %s5, %s3
  // Predicated region
  $region2: #{gat_autoencoder_forward.1} parent=0 // pred_check
    _
  $region3: #{gat_autoencoder_forward.1} parent=0 // pred_check_branch
    %8 = sbr.rel (0) target = $region5
  $region4: #{gat_autoencoder_forward.1} parent=0 // pred_region
    _
  $region5: #{gat_autoencoder_forward.1} parent=0 // pred_fallthru
    _
  // Predicated region
  $region6: #{gat_autoencoder_forward.1} parent=0 // pred_check
    _
  $region7: #{gat_autoencoder_forward.1} parent=0 // pred_check_branch
    %10 = sbr.rel (0) target = $region9
  $region8: #{gat_autoencoder_forward.1} parent=0 // pred_region
    _
  $region9: #{gat_autoencoder_forward.1} parent=0 // pred_fallthru
    _
  %v11 = vld [vmem:[%s0] sm:$0xff]
  %v12 = vld [vmem:[%s0 + $0x8] sm:$0xf]
  %v13 = vld [vmem:[%s0 + $0x10] sm:$0xff]
  %v14 = vld [vmem:[%s0 + $0x18] sm:$0x3]
  %v15 = vld [vmem:[%s0 + $0x20] sm:$0x3]
  %v16 = vcvt.f32.s32.to.zero.pseudo %v15
  %v17 = vlaneseq
  %v18 = vshrl.u32 %v17, 7
  %v19 = vadd.s32 %v18, 8
  %v20 = vperm.slane %v16, 0
  %vm21 = vcmp.eq.s32.totalorder %v18, %v20
  %vm22 = vcmp.eq.s32.totalorder %v19, %v20
  %v23 = vsel %vm21, 1, 0
  %v24 = vsel %vm22, 1, 0
  %v25 = vcvt.s32.f32 %v23
  %v26 = vcvt.s32.f32 %v24
  %v27 = vperm.slane %v16, 1
  %vm28 = vcmp.eq.s32.totalorder %v18, %v27
  %vm29 = vcmp.eq.s32.totalorder %v19, %v27
  %v30 = vsel %vm28, 1, 0
  %v31 = vsel %vm29, 1, 0
  %v32 = vcvt.s32.f32 %v30
  %v33 = vcvt.s32.f32 %v31
  %34 = vmatpush.xpose.msra.mxu0 0.0
  %35 = vmatpush.xpose.msra.mxu0 0.0
  %36 = vmatpush.xpose.msra.mxu0 0.0
  %37 = vmatpush.xpose.msra.mxu0 0.0
  %38 = vmatpush.xpose.msra.mxu0 0.0
  %39 = vmatpush.xpose.msra.mxu0 0.0
  %40 = vmatpush.xpose.msra.mxu0 0.0
  %41 = vmatpush.xpose.msra.mxu0 0.0
  %42 = vmatpush.xpose.msra.mxu0 0.0
  %43 = vmatpush.xpose.msra.mxu0 0.0
  %44 = vmatpush.xpose.msra.mxu0 0.0
  %45 = vmatpush.xpose.msra.mxu0 0.0
  %46 = vmatpush.xpose.msra.mxu0 0.0
  %47 = vmatpush.xpose.msra.mxu0 0.0
  %48 = vmatpush.xpose.msra.mxu0 %v33
  %49 = vmatpush.xpose.msra.mxu0 %v32
  %50 = vmatmul.f32.gmra.mxu0 %v25
  %v51 = vpop.f32.mrf.mxu0
  %v52 = vadd.f32 0.0, %v51
  %53 = vmatmul.f32.gmra.mxu0 %v26
  %v54 = vpop.f32.mrf.mxu0
  %v55 = vadd.f32 0.0, %v54
  %56 = vdwg.mxu0
  %v57 = vlaneseq
  %v58 = vand.u32 %v57, 127
  %vm59 = vcmp.eq.s32.totalorder %v18, %v58
  %vm60 = vcmp.eq.s32.totalorder %v19, %v58
  %vm61 = vcmp.gt.f32.partialorder %v52, 0.5
  %vm62 = vcmp.gt.f32.partialorder %v55, 0.5
  %vm63 = vmor %vm59, %vm61
  %vm64 = vmor %vm60, %vm62
  %v65 = vsel %vm63, 1.0, 0.0
  %v66 = vsel %vm64, 1.0, 0.0
  %v67 = vld [vmem:[%s1] sm:$0xff]
  %v68 = vld [vmem:[%s1 + $0x8] sm:$0x1]
  %v69 = vld [vmem:[%s1 + $0x10] sm:$0xff]
  %v70 = vld [vmem:[%s1 + $0x18] sm:$0xff]
  %v71 = vld [vmem:[%s1 + $0x20] sm:$0xff]
  %v72 = vld [vmem:[%s1 + $0x28] sm:$0xff]
  %v73 = vld [vmem:[%s1 + $0x30] sm:$0x1]
  %v74 = vperm.slane %v68, 0
  %vm75 = vcmask 64512
  %v77 = vsel %vm75, %v11, 0
  %v80 = vsel %vm75, %v12, 0
  %82 = vmatpush.msra.mxu0 0.0
  %83 = vmatpush.msra.mxu0 0.0
  %84 = vmatpush.msra.mxu0 0.0
  %85 = vmatpush.msra.mxu0 0.0
  %86 = vmatpush.msra.mxu0 0.0
  %87 = vmatpush.msra.mxu0 0.0
  %88 = vmatpush.msra.mxu0 0.0
  %89 = vmatpush.msra.mxu0 0.0
  %90 = vmatpush.msra.mxu0 0.0
  %91 = vmatpush.msra.mxu0 0.0
  %92 = vmatpush.msra.mxu0 0.0
  %93 = vmatpush.msra.mxu0 0.0
  %94 = vmatpush.msra.mxu0 0.0
  %95 = vmatpush.msra.mxu0 0.0
  %96 = vmatpush.msra.mxu0 0.0
  %97 = vmatpush.msra.mxu0 %v67
  %98 = vmatmul.f32.gmra.mxu0 %v77
  %v99 = vpop.f32.mrf.mxu0
  %v100 = vadd.f32 %v74, %v99
  %101 = vmatmul.f32.gmra.mxu0 %v80
  %v102 = vpop.f32.mrf.mxu0
  %v103 = vadd.f32 %v74, %v102
  %104 = vdwg.mxu0
  %vm105 = vcmp.gt.f32.partialorder %v100, 0.0
  %vm106 = vcmp.gt.f32.partialorder %v103, 0.0
  %v107 = vmin.f32 %v100, 0.0
  %v108 = vmin.f32 %v103, 0.0
  %v109 = vmul.f32 %v107, 1.442695
  %v110 = vpow.pop %v109
  %v111 = vmul.f32 %v108, 1.442695
  %v112 = vpow.pop %v111
  %v113 = vsub.f32 %v110, 1.0
  %v114 = vsub.f32 %v112, 1.0
  %v115 = vsel %vm105, %v100, %v113
  %v116 = vsel %vm106, %v103, %v114
  %v117 = vperm.slane %v73, 0
  %vm118 = vcmask 261120
  %v120 = vsel %vm118, %v115, 0
  %v123 = vsel %vm118, %v116, 0
  %125 = vmatpush.msra.mxu0 0.0
  %126 = vmatpush.msra.mxu0 0.0
  %127 = vmatpush.msra.mxu0 0.0
  %128 = vmatpush.msra.mxu0 0.0
  %129 = vmatpush.msra.mxu0 0.0
  %130 = vmatpush.msra.mxu0 0.0
  %131 = vmatpush.msra.mxu0 0.0
  %132 = vmatpush.msra.mxu0 0.0
  %133 = vmatpush.msra.mxu0 0.0
  %134 = vmatpush.msra.mxu0 0.0
  %135 = vmatpush.msra.mxu0 0.0
  %136 = vmatpush.msra.mxu0 0.0
  %137 = vmatpush.msra.mxu0 %v72
  %138 = vmatpush.msra.mxu0 %v71
  %139 = vmatpush.msra.mxu0 %v70
  %140 = vmatpush.msra.mxu0 %v69
  %141 = vmatmul.f32.gmra.mxu0 %v120
  %v142 = vpop.f32.mrf.mxu0
  %v143 = vadd.f32 %v117, %v142
  %144 = vmatmul.f32.gmra.mxu0 %v123
  %v145 = vpop.f32.mrf.mxu0
  %v146 = vadd.f32 %v117, %v145
  %147 = vdwg.mxu0
  %v148 = vld [vmem:[%s1 + $0x50] sm:$0x3f]
  %v149 = vld [vmem:[%s1 + $0x58] sm:$0x1]
  %v150 = vld [vmem:[%s1 + $0x60] sm:$0xff]
  %v151 = vld [vmem:[%s1 + $0x68] sm:$0xff]
  %v152 = vld [vmem:[%s1 + $0x70] sm:$0xff]
  %v153 = vld [vmem:[%s1 + $0x78] sm:$0xff]
  %v154 = vld [vmem:[%s1 + $0x80] sm:$0x1]
  %v155 = vld [vmem:[%s1 + $0xa0] sm:$0xff]
  %v156 = vld [vmem:[%s1 + $0xa8] sm:$0xff]
  %v157 = vld [vmem:[%s1 + $0xb0] sm:$0xff]
  %v158 = vld [vmem:[%s1 + $0xb8] sm:$0xff]
  %v159 = vld [vmem:[%s1 + $0xc0] sm:$0xff]
  %v160 = vld [vmem:[%s1 + $0xc8] sm:$0xff]
  %v161 = vld [vmem:[%s1 + $0xd0] sm:$0xff]
  %v162 = vld [vmem:[%s1 + $0xd8] sm:$0xff]
  %v163 = vld [vmem:[%s1 + $0xe0] sm:$0xff]
  %v164 = vld [vmem:[%s1 + $0xe8] sm:$0xff]
  %v165 = vld [vmem:[%s1 + $0xf0] sm:$0xff]
  %v166 = vld [vmem:[%s1 + $0xf8] sm:$0x3]
  %v167 = vld [vmem:[%s1 + $0x100] sm:$0xff]
  %v168 = vld [vmem:[%s1 + $0x108] sm:$0xff]
  %v169 = vld [vmem:[%s1 + $0x110] sm:$0xff]
  %v170 = vld [vmem:[%s1 + $0x118] sm:$0xff]
  %v171 = vld [vmem:[%s1 + $0x120] sm:$0xff]
  %vm172 = vcmask 48128
  %v174 = vsel %vm172, %v13, 0
  %v177 = vsel %vm172, %v14, 0
  %vm179 = vcmask 1045504
  %v181 = vsel %vm179, %v148, 0
  %183 = vmatpush.msra.mxu0 0.0
  %184 = vmatpush.msra.mxu0 0.0
  %185 = vmatpush.msra.mxu0 0.0
  %186 = vmatpush.msra.mxu0 0.0
  %187 = vmatpush.msra.mxu0 0.0
  %188 = vmatpush.msra.mxu0 0.0
  %189 = vmatpush.msra.mxu0 0.0
  %190 = vmatpush.msra.mxu0 0.0
  %191 = vmatpush.msra.mxu0 0.0
  %192 = vmatpush.msra.mxu0 0.0
  %193 = vmatpush.msra.mxu0 0.0
  %194 = vmatpush.msra.mxu0 0.0
  %195 = vmatpush.msra.mxu0 0.0
  %196 = vmatpush.msra.mxu0 0.0
  %197 = vmatpush.msra.mxu0 0.0
  %198 = vmatpush.msra.mxu0 %v181
  %199 = vmatmul.f32.gmra.mxu0 %v174
  %v200 = vpop.f32.mrf.mxu0
  %v201 = vadd.f32 0.0, %v200
  %202 = vmatmul.f32.gmra.mxu0 %v177
  %v203 = vpop.f32.mrf.mxu0
  %v204 = vadd.f32 0.0, %v203
  %205 = vdwg.mxu0
  %208 = vrot.lane.b32.xlu0 %v201, 96
  %v209 = vpop.permute.xlu0 %208
  %210 = vrot.lane.b32.xlu0 %v204, 96
  %v211 = vpop.permute.xlu0 %210
  %vm213 = vcmask 80896
  %v215 = vsel %vm213, %v155, 0
  %v218 = vsel %vm213, %v156, 0
  %v221 = vsel %vm213, %v157, 0
  %v224 = vsel %vm213, %v158, 0
  %v227 = vsel %vm213, %v159, 0
  %vm229 = vcmask 1041408
  %v230 = vsel %vm229, %v211, 0
  %232 = vmatpush.msra.mxu0 0.0
  %233 = vmatpush.msra.mxu0 0.0
  %234 = vmatpush.msra.mxu0 0.0
  %235 = vmatpush.msra.mxu0 0.0
  %236 = vmatpush.msra.mxu0 0.0
  %237 = vmatpush.msra.mxu0 0.0
  %238 = vmatpush.msra.mxu0 0.0
  %239 = vmatpush.msra.mxu0 0.0
  %240 = vmatpush.msra.mxu0 0.0
  %241 = vmatpush.msra.mxu0 0.0
  %242 = vmatpush.msra.mxu0 0.0
  %243 = vmatpush.msra.mxu0 0.0
  %244 = vmatpush.msra.mxu0 0.0
  %245 = vmatpush.msra.mxu0 0.0
  %246 = vmatpush.msra.mxu0 %v230
  %247 = vmatpush.msra.mxu0 %v209
  %248 = vmatmul.f32.gmra.mxu0 %v215
  %v249 = vpop.f32.mrf.mxu0
  %v250 = vadd.f32 0.0, %v249
  %251 = vmatmul.f32.gmra.mxu0 %v218
  %v252 = vpop.f32.mrf.mxu0
  %v253 = vadd.f32 0.0, %v252
  %254 = vmatmul.f32.gmra.mxu0 %v221
  %v255 = vpop.f32.mrf.mxu0
  %v256 = vadd.f32 0.0, %v255
  %257 = vmatmul.f32.gmra.mxu0 %v224
  %v258 = vpop.f32.mrf.mxu0
  %v259 = vadd.f32 0.0, %v258
  %260 = vmatmul.f32.gmra.mxu0 %v227
  %v261 = vpop.f32.mrf.mxu0
  %v262 = vadd.f32 0.0, %v261
  %263 = vdwg.mxu0
  %v264 = vmul.f32 %v250, %v160
  %v265 = vmul.f32 %v253, %v161
  %v266 = vmul.f32 %v256, %v162
  %v267 = vmul.f32 %v259, %v163
  %v268 = vmul.f32 %v262, %v164
  %vm269 = vcmask 31744
  %v270 = vsel %vm269, %v264, 0.0
  %271 = vadd.xlane.f32.xlu0 %v270
  %v272 = vpop.xlane.xlu0 %271
  %v273 = vsel %vm269, %v265, 0.0
  %274 = vadd.xlane.f32.xlu0 %v273
  %v275 = vpop.xlane.xlu0 %274
  %v276 = vsel %vm269, %v266, 0.0
  %277 = vadd.xlane.f32.xlu0 %v276
  %v278 = vpop.xlane.xlu0 %277
  %v279 = vsel %vm269, %v267, 0.0
  %280 = vadd.xlane.f32.xlu0 %v279
  %v281 = vpop.xlane.xlu0 %280
  %v282 = vsel %vm269, %v268, 0.0
  %283 = vadd.xlane.f32.xlu0 %v282
  %v284 = vpop.xlane.xlu0 %283
  %285 = vrot.lane.b32.xlu0 %v201, 92
  %v286 = vpop.permute.xlu0 %285
  %287 = vrot.lane.b32.xlu0 %v204, 92
  %v288 = vpop.permute.xlu0 %287
  %v290 = vsel %vm269, %v160, 0
  %v293 = vsel %vm269, %v161, 0
  %v296 = vsel %vm269, %v162, 0
  %v299 = vsel %vm269, %v163, 0
  %v302 = vsel %vm269, %v164, 0
  %v304 = vsel %vm269, %v286, 0
  %v306 = vsel %vm269, %v288, 0
  %308 = vmatpush.xpose.msra.mxu0 0.0
  %309 = vmatpush.xpose.msra.mxu0 0.0
  %310 = vmatpush.xpose.msra.mxu0 0.0
  %311 = vmatpush.xpose.msra.mxu0 0.0
  %312 = vmatpush.xpose.msra.mxu0 0.0
  %313 = vmatpush.xpose.msra.mxu0 0.0
  %314 = vmatpush.xpose.msra.mxu0 0.0
  %315 = vmatpush.xpose.msra.mxu0 0.0
  %316 = vmatpush.xpose.msra.mxu0 0.0
  %317 = vmatpush.xpose.msra.mxu0 0.0
  %318 = vmatpush.xpose.msra.mxu0 0.0
  %319 = vmatpush.xpose.msra.mxu0 0.0
  %320 = vmatpush.xpose.msra.mxu0 0.0
  %321 = vmatpush.xpose.msra.mxu0 0.0
  %322 = vmatpush.xpose.msra.mxu0 %v306
  %323 = vmatpush.xpose.msra.mxu0 %v304
  %324 = vmatmul.f32.gmra.mxu0 %v290
  %v325 = vpop.f32.mrf.mxu0
  %v326 = vadd.f32 0.0, %v325
  %327 = vmatmul.f32.gmra.mxu0 %v293
  %v328 = vpop.f32.mrf.mxu0
  %v329 = vadd.f32 0.0, %v328
  %330 = vmatmul.f32.gmra.mxu0 %v296
  %v331 = vpop.f32.mrf.mxu0
  %v332 = vadd.f32 0.0, %v331
  %333 = vmatmul.f32.gmra.mxu0 %v299
  %v334 = vpop.f32.mrf.mxu0
  %v335 = vadd.f32 0.0, %v334
  %336 = vmatmul.f32.gmra.mxu0 %v302
  %v337 = vpop.f32.mrf.mxu0
  %v338 = vadd.f32 0.0, %v337
  %339 = vdwg.mxu0
  %v341 = vsel %vm229, %v66, 0
  %343 = vmatpush.msra.mxu0 0.0
  %344 = vmatpush.msra.mxu0 0.0
  %345 = vmatpush.msra.mxu0 0.0
  %346 = vmatpush.msra.mxu0 0.0
  %347 = vmatpush.msra.mxu0 0.0
  %348 = vmatpush.msra.mxu0 0.0
  %349 = vmatpush.msra.mxu0 0.0
  %350 = vmatpush.msra.mxu0 0.0
  %351 = vmatpush.msra.mxu0 0.0
  %352 = vmatpush.msra.mxu0 0.0
  %353 = vmatpush.msra.mxu0 0.0
  %354 = vmatpush.msra.mxu0 0.0
  %355 = vmatpush.msra.mxu0 0.0
  %356 = vmatpush.msra.mxu0 0.0
  %357 = vmatpush.msra.mxu0 %v341
  %358 = vmatpush.msra.mxu0 %v65
  %359 = vmatmul.f32.gmra.mxu0 %v215
  %v360 = vpop.f32.mrf.mxu0
  %v361 = vadd.f32 0.0, %v360
  %362 = vmatmul.f32.gmra.mxu0 %v218
  %v363 = vpop.f32.mrf.mxu0
  %v364 = vadd.f32 0.0, %v363
  %365 = vmatmul.f32.gmra.mxu0 %v221
  %v366 = vpop.f32.mrf.mxu0
  %v367 = vadd.f32 0.0, %v366
  %368 = vmatmul.f32.gmra.mxu0 %v224
  %v369 = vpop.f32.mrf.mxu0
  %v370 = vadd.f32 0.0, %v369
  %371 = vmatmul.f32.gmra.mxu0 %v227
  %v372 = vpop.f32.mrf.mxu0
  %v373 = vadd.f32 0.0, %v372
  %374 = vdwg.mxu0
  %v375 = vadd.f32 %v272, %v326
  %v376 = vadd.f32 %v275, %v329
  %v377 = vadd.f32 %v278, %v332
  %v378 = vadd.f32 %v281, %v335
  %v379 = vadd.f32 %v284, %v338
  %vm380 = vcmp.gt.f32.partialorder %v375, 0.0
  %vm381 = vcmp.gt.f32.partialorder %v376, 0.0
  %vm382 = vcmp.gt.f32.partialorder %v377, 0.0
  %vm383 = vcmp.gt.f32.partialorder %v378, 0.0
  %vm384 = vcmp.gt.f32.partialorder %v379, 0.0
  %v385 = vmul.f32 %v375, 0.2
  %v386 = vmul.f32 %v376, 0.2
  %v387 = vmul.f32 %v377, 0.2
  %v388 = vmul.f32 %v378, 0.2
  %v389 = vmul.f32 %v379, 0.2
  %v390 = vsel %vm380, %v375, %v385
  %v391 = vsel %vm381, %v376, %v386
  %v392 = vsel %vm382, %v377, %v387
  %v393 = vsel %vm383, %v378, %v388
  %v394 = vsel %vm384, %v379, %v389
  %vm395 = vcmp.gt.f32.partialorder %v361, 0.5
  %vm396 = vcmp.gt.f32.partialorder %v364, 0.5
  %vm397 = vcmp.gt.f32.partialorder %v367, 0.5
  %vm398 = vcmp.gt.f32.partialorder %v370, 0.5
  %vm399 = vcmp.gt.f32.partialorder %v373, 0.5
  %v400 = vsel %vm395, %v390, -1e+30
  %v401 = vsel %vm396, %v391, -1e+30
  %v402 = vsel %vm397, %v392, -1e+30
  %v403 = vsel %vm398, %v393, -1e+30
  %v404 = vsel %vm399, %v394, -1e+30
  %v405 = vsel %vm213, %v400, -inf
  %406 = vmax.xlane.f32.xlu0 %v405
  %v407 = vpop.xlane.xlu0 %406
  %v408 = vsel %vm213, %v401, -inf
  %409 = vmax.xlane.f32.xlu0 %v408
  %v410 = vpop.xlane.xlu0 %409
  %v411 = vsel %vm213, %v402, -inf
  %412 = vmax.xlane.f32.xlu0 %v411
  %v413 = vpop.xlane.xlu0 %412
  %v414 = vsel %vm213, %v403, -inf
  %415 = vmax.xlane.f32.xlu0 %v414
  %v416 = vpop.xlane.xlu0 %415
  %v417 = vsel %vm213, %v404, -inf
  %418 = vmax.xlane.f32.xlu0 %v417
  %v419 = vpop.xlane.xlu0 %418
  %v420 = vsub.f32 %v400, %v407
  %v421 = vsub.f32 %v401, %v410
  %v422 = vsub.f32 %v402, %v413
  %v423 = vsub.f32 %v403, %v416
  %v424 = vsub.f32 %v404, %v419
  %v425 = vmul.f32 %v420, 1.442695
  %v426 = vpow.pop %v425
  %v427 = vmul.f32 %v421, 1.442695
  %v428 = vpow.pop %v427
  %v429 = vmul.f32 %v422, 1.442695
  %v430 = vpow.pop %v429
  %v431 = vmul.f32 %v423, 1.442695
  %v432 = vpow.pop %v431
  %v433 = vmul.f32 %v424, 1.442695
  %v434 = vpow.pop %v433
  %v435 = vsel %vm395, %v426, 0.0
  %v436 = vsel %vm396, %v428, 0.0
  %v437 = vsel %vm397, %v430, 0.0
  %v438 = vsel %vm398, %v432, 0.0
  %v439 = vsel %vm399, %v434, 0.0
  %v440 = vsel %vm213, %v435, 0.0
  %441 = vadd.xlane.f32.xlu0 %v440
  %v442 = vpop.xlane.xlu0 %441
  %v443 = vsel %vm213, %v436, 0.0
  %444 = vadd.xlane.f32.xlu0 %v443
  %v445 = vpop.xlane.xlu0 %444
  %v446 = vsel %vm213, %v437, 0.0
  %447 = vadd.xlane.f32.xlu0 %v446
  %v448 = vpop.xlane.xlu0 %447
  %v449 = vsel %vm213, %v438, 0.0
  %450 = vadd.xlane.f32.xlu0 %v449
  %v451 = vpop.xlane.xlu0 %450
  %v452 = vsel %vm213, %v439, 0.0
  %453 = vadd.xlane.f32.xlu0 %v452
  %v454 = vpop.xlane.xlu0 %453
  %v455 = vrcp.pop %v442
  %v456 = vrcp.pop %v445
  %v457 = vrcp.pop %v448
  %v458 = vrcp.pop %v451
  %v459 = vrcp.pop %v454
  %v460 = vmul.f32 %v435, %v455
  %v461 = vmul.f32 %v436, %v456
  %v462 = vmul.f32 %v437, %v457
  %v463 = vmul.f32 %v438, %v458
  %v464 = vmul.f32 %v439, %v459
  %v466 = vsel %vm213, %v460, 0
  %v469 = vsel %vm213, %v461, 0
  %v472 = vsel %vm213, %v462, 0
  %v475 = vsel %vm213, %v463, 0
  %v478 = vsel %vm213, %v464, 0
  %v480 = vsel %vm229, %v204, 0
  %482 = vmatpush.msra.mxu0 0.0
  %483 = vmatpush.msra.mxu0 0.0
  %484 = vmatpush.msra.mxu0 0.0
  %485 = vmatpush.msra.mxu0 0.0
  %486 = vmatpush.msra.mxu0 0.0
  %487 = vmatpush.msra.mxu0 0.0
  %488 = vmatpush.msra.mxu0 0.0
  %489 = vmatpush.msra.mxu0 0.0
  %490 = vmatpush.msra.mxu0 0.0
  %491 = vmatpush.msra.mxu0 0.0
  %492 = vmatpush.msra.mxu0 0.0
  %493 = vmatpush.msra.mxu0 0.0
  %494 = vmatpush.msra.mxu0 0.0
  %495 = vmatpush.msra.mxu0 0.0
  %496 = vmatpush.msra.mxu0 %v480
  %497 = vmatpush.msra.mxu0 %v201
  %498 = vmatmul.f32.gmra.mxu0 %v466
  %v499 = vpop.f32.mrf.mxu0
  %v500 = vadd.f32 0.0, %v499
  %501 = vmatmul.f32.gmra.mxu0 %v469
  %v502 = vpop.f32.mrf.mxu0
  %v503 = vadd.f32 0.0, %v502
  %504 = vmatmul.f32.gmra.mxu0 %v472
  %v505 = vpop.f32.mrf.mxu0
  %v506 = vadd.f32 0.0, %v505
  %507 = vmatmul.f32.gmra.mxu0 %v475
  %v508 = vpop.f32.mrf.mxu0
  %v509 = vadd.f32 0.0, %v508
  %510 = vmatmul.f32.gmra.mxu0 %v478
  %v511 = vpop.f32.mrf.mxu0
  %v512 = vadd.f32 0.0, %v511
  %513 = vdwg.mxu0
  %v514 = vmul.f32 %v500, %v167
  %v515 = vmul.f32 %v503, %v168
  %v516 = vmul.f32 %v506, %v169
  %v517 = vmul.f32 %v509, %v170
  %v518 = vmul.f32 %v512, %v171
  %v519 = vperm.slane %v149, 0
  %vm520 = vcmask 326656
  %v522 = vsel %vm520, %v165, 0
  %v525 = vsel %vm520, %v166, 0
  %527 = vmatpush.msra.mxu0 0.0
  %528 = vmatpush.msra.mxu0 0.0
  %529 = vmatpush.msra.mxu0 0.0
  %530 = vmatpush.msra.mxu0 0.0
  %531 = vmatpush.msra.mxu0 0.0
  %532 = vmatpush.msra.mxu0 0.0
  %533 = vmatpush.msra.mxu0 0.0
  %534 = vmatpush.msra.mxu0 0.0
  %535 = vmatpush.msra.mxu0 0.0
  %536 = vmatpush.msra.mxu0 0.0
  %537 = vmatpush.msra.mxu0 0.0
  %538 = vmatpush.msra.mxu0 %v518
  %539 = vmatpush.msra.mxu0 %v517
  %540 = vmatpush.msra.mxu0 %v516
  %541 = vmatpush.msra.mxu0 %v515
  %542 = vmatpush.msra.mxu0 %v514
  %543 = vmatmul.f32.gmra.mxu0 %v522
  %v544 = vpop.f32.mrf.mxu0
  %v545 = vadd.f32 %v519, %v544
  %546 = vmatmul.f32.gmra.mxu0 %v525
  %v547 = vpop.f32.mrf.mxu0
  %v548 = vadd.f32 %v519, %v547
  %549 = vdwg.mxu0
  %vm550 = vcmp.gt.f32.partialorder %v545, 0.0
  %vm551 = vcmp.gt.f32.partialorder %v548, 0.0
  %v552 = vmin.f32 %v545, 0.0
  %v553 = vmin.f32 %v548, 0.0
  %v554 = vmul.f32 %v552, 1.442695
  %v555 = vpow.pop %v554
  %v556 = vmul.f32 %v553, 1.442695
  %v557 = vpow.pop %v556
  %v558 = vsub.f32 %v555, 1.0
  %v559 = vsub.f32 %v557, 1.0
  %v560 = vsel %vm550, %v545, %v558
  %v561 = vsel %vm551, %v548, %v559
  %v563 = vsel %vm118, %v560, 0
  %v566 = vsel %vm118, %v561, 0
  %568 = vmatpush.msra.mxu0 0.0
  %569 = vmatpush.msra.mxu0 0.0
  %570 = vmatpush.msra.mxu0 0.0
  %571 = vmatpush.msra.mxu0 0.0
  %572 = vmatpush.msra.mxu0 0.0
  %573 = vmatpush.msra.mxu0 0.0
  %574 = vmatpush.msra.mxu0 0.0
  %575 = vmatpush.msra.mxu0 0.0
  %576 = vmatpush.msra.mxu0 0.0
  %577 = vmatpush.msra.mxu0 0.0
  %578 = vmatpush.msra.mxu0 0.0
  %579 = vmatpush.msra.mxu0 0.0
  %580 = vmatpush.msra.mxu0 %v153
  %581 = vmatpush.msra.mxu0 %v152
  %582 = vmatpush.msra.mxu0 %v151
  %583 = vmatpush.msra.mxu0 %v150
  %584 = vmatmul.f32.gmra.mxu0 %v563
  %v585 = vpop.f32.mrf.mxu0
  %v586 = vadd.f32 0.0, %v585
  %587 = vmatmul.f32.gmra.mxu0 %v566
  %v588 = vpop.f32.mrf.mxu0
  %v589 = vadd.f32 0.0, %v588
  %590 = vdwg.mxu0
  %593 = vrot.lane.b32.xlu0 %v586, 111
  %v594 = vpop.permute.xlu0 %593
  %595 = vrot.lane.b32.xlu0 %v589, 111
  %v596 = vpop.permute.xlu0 %595
  %vm597 = vcmask 7168
  %v599 = vsel %vm597, 1.0, 0
  %v601 = vsel %vm597, %v594, 0
  %v603 = vsel %vm597, %v596, 0
  %605 = vmatpush.xpose.msra.mxu0 0.0
  %606 = vmatpush.xpose.msra.mxu0 0.0
  %607 = vmatpush.xpose.msra.mxu0 0.0
  %608 = vmatpush.xpose.msra.mxu0 0.0
  %609 = vmatpush.xpose.msra.mxu0 0.0
  %610 = vmatpush.xpose.msra.mxu0 0.0
  %611 = vmatpush.xpose.msra.mxu0 0.0
  %612 = vmatpush.xpose.msra.mxu0 0.0
  %613 = vmatpush.xpose.msra.mxu0 0.0
  %614 = vmatpush.xpose.msra.mxu0 0.0
  %615 = vmatpush.xpose.msra.mxu0 0.0
  %616 = vmatpush.xpose.msra.mxu0 0.0
  %617 = vmatpush.xpose.msra.mxu0 0.0
  %618 = vmatpush.xpose.msra.mxu0 0.0
  %619 = vmatpush.xpose.msra.mxu0 %v603
  %620 = vmatpush.xpose.msra.mxu0 %v601
  %621 = vmatmul.f32.gmra.mxu0 %v599
  %v622 = vpop.f32.mrf.mxu0
  %v623 = vadd.f32 0.0, %v622
  %624 = vmatmul.f32.gmra.mxu0 %v599
  %v625 = vpop.f32.mrf.mxu0
  %v626 = vadd.f32 0.0, %v625
  %627 = vdwg.mxu0
  %628 = vset.pattern.permute.xlu0 16
  %629 = vperm.xlu0 %628, %v586
  %v630 = vpop.permute.xlu0 %629
  %632 = vset.pattern.permute.xlu0 16
  %633 = vperm.xlu0 %632, %v589
  %v634 = vpop.permute.xlu0 %633
  %v636 = vadd.f32 %v630, %v623
  %v637 = vadd.f32 %v634, %v626
  %vm638 = vcmp.gt.f32.partialorder %v636, 0.0
  %vm639 = vcmp.gt.f32.partialorder %v637, 0.0
  %v640 = vmul.f32 %v636, 0.2
  %v641 = vmul.f32 %v637, 0.2
  %v642 = vsel %vm638, %v636, %v640
  %v643 = vsel %vm639, %v637, %v641
  %vm644 = vcmp.gt.f32.partialorder %v65, 0.5
  %vm645 = vcmp.gt.f32.partialorder %v66, 0.5
  %v646 = vsel %vm644, %v642, -1e+30
  %v647 = vsel %vm645, %v643, -1e+30
  %v648 = vsel %vm213, %v646, -inf
  %649 = vmax.xlane.f32.xlu0 %v648
  %v650 = vpop.xlane.xlu0 %649
  %vm651 = vcmask 74752
  %v652 = vsel %vm651, %v647, -inf
  %653 = vmax.xlane.f32.xlu0 %v652
  %v654 = vpop.xlane.xlu0 %653
  %v655 = vsub.f32 %v646, %v650
  %v656 = vsub.f32 %v647, %v654
  %v657 = vmul.f32 %v655, 1.442695
  %v658 = vpow.pop %v657
  %v659 = vmul.f32 %v656, 1.442695
  %v660 = vpow.pop %v659
  %v661 = vsel %vm644, %v658, 0.0
  %v662 = vsel %vm645, %v660, 0.0
  %v663 = vsel %vm213, %v661, 0.0
  %664 = vadd.xlane.f32.xlu0 %v663
  %v665 = vpop.xlane.xlu0 %664
  %v666 = vsel %vm651, %v662, 0.0
  %667 = vadd.xlane.f32.xlu0 %v666
  %v668 = vpop.xlane.xlu0 %667
  %v669 = vrcp.pop %v665
  %v670 = vrcp.pop %v668
  %v671 = vmul.f32 %v661, %v669
  %v672 = vmul.f32 %v662, %v670
  %v673 = vperm.slane %v154, 0
  %v675 = vsel %vm213, %v671, 0
  %v678 = vsel %vm213, %v672, 0
  %v680 = vsel %vm229, %v589, 0
  %682 = vmatpush.msra.mxu0 0.0
  %683 = vmatpush.msra.mxu0 0.0
  %684 = vmatpush.msra.mxu0 0.0
  %685 = vmatpush.msra.mxu0 0.0
  %686 = vmatpush.msra.mxu0 0.0
  %687 = vmatpush.msra.mxu0 0.0
  %688 = vmatpush.msra.mxu0 0.0
  %689 = vmatpush.msra.mxu0 0.0
  %690 = vmatpush.msra.mxu0 0.0
  %691 = vmatpush.msra.mxu0 0.0
  %692 = vmatpush.msra.mxu0 0.0
  %693 = vmatpush.msra.mxu0 0.0
  %694 = vmatpush.msra.mxu0 0.0
  %695 = vmatpush.msra.mxu0 0.0
  %696 = vmatpush.msra.mxu0 %v680
  %697 = vmatpush.msra.mxu0 %v586
  %698 = vmatmul.f32.gmra.mxu0 %v675
  %v699 = vpop.f32.mrf.mxu0
  %v700 = vadd.f32 %v673, %v699
  %701 = vmatmul.f32.gmra.mxu0 %v678
  %v702 = vpop.f32.mrf.mxu0
  %v703 = vadd.f32 %v673, %v702
  %704 = vdwg.mxu0
  %v705 = vld [vmem:[%s1 + $0x38] sm:$0xff]
  %v706 = vld [vmem:[%s1 + $0x40] sm:$0xff]
  %v707 = vld [vmem:[%s1 + $0x48] sm:$0x1]
  %v708 = vld [vmem:[%s1 + $0x88] sm:$0xff]
  %v709 = vld [vmem:[%s1 + $0x90] sm:$0xff]
  %v710 = vld [vmem:[%s1 + $0x98] sm:$0x1]
  %v711 = vperm.slane %v707, 0
  %vm712 = vcmask 130048
  %v714 = vsel %vm712, %v143, 0
  %v717 = vsel %vm712, %v146, 0
  %719 = vmatpush.msra.mxu0 0.0
  %720 = vmatpush.msra.mxu0 0.0
  %721 = vmatpush.msra.mxu0 0.0
  %722 = vmatpush.msra.mxu0 0.0
  %723 = vmatpush.msra.mxu0 0.0
  %724 = vmatpush.msra.mxu0 0.0
  %725 = vmatpush.msra.mxu0 0.0
  %726 = vmatpush.msra.mxu0 0.0
  %727 = vmatpush.msra.mxu0 0.0
  %728 = vmatpush.msra.mxu0 0.0
  %729 = vmatpush.msra.mxu0 0.0
  %730 = vmatpush.msra.mxu0 0.0
  %731 = vmatpush.msra.mxu0 0.0
  %732 = vmatpush.msra.mxu0 0.0
  %733 = vmatpush.msra.mxu0 %v706
  %734 = vmatpush.msra.mxu0 %v705
  %735 = vmatmul.f32.gmra.mxu0 %v714
  %v736 = vpop.f32.mrf.mxu0
  %v737 = vadd.f32 %v711, %v736
  %738 = vmatmul.f32.gmra.mxu0 %v717
  %v739 = vpop.f32.mrf.mxu0
  %v740 = vadd.f32 %v711, %v739
  %741 = vdwg.mxu0
  %v742 = vperm.slane %v710, 0
  %v744 = vsel %vm712, %v700, 0
  %v747 = vsel %vm712, %v703, 0
  %749 = vmatpush.msra.mxu0 0.0
  %750 = vmatpush.msra.mxu0 0.0
  %751 = vmatpush.msra.mxu0 0.0
  %752 = vmatpush.msra.mxu0 0.0
  %753 = vmatpush.msra.mxu0 0.0
  %754 = vmatpush.msra.mxu0 0.0
  %755 = vmatpush.msra.mxu0 0.0
  %756 = vmatpush.msra.mxu0 0.0
  %757 = vmatpush.msra.mxu0 0.0
  %758 = vmatpush.msra.mxu0 0.0
  %759 = vmatpush.msra.mxu0 0.0
  %760 = vmatpush.msra.mxu0 0.0
  %761 = vmatpush.msra.mxu0 0.0
  %762 = vmatpush.msra.mxu0 0.0
  %763 = vmatpush.msra.mxu0 %v709
  %764 = vmatpush.msra.mxu0 %v708
  %765 = vmatmul.f32.gmra.mxu0 %v744
  %v766 = vpop.f32.mrf.mxu0
  %v767 = vadd.f32 %v742, %v766
  %768 = vmatmul.f32.gmra.mxu0 %v747
  %v769 = vpop.f32.mrf.mxu0
  %v770 = vadd.f32 %v742, %v769
  %771 = vdwg.mxu0
  %772 = vmatpush.xpose.msra.mxu0 0.0
  %773 = vmatpush.xpose.msra.mxu0 0.0
  %774 = vmatpush.xpose.msra.mxu0 0.0
  %775 = vmatpush.xpose.msra.mxu0 0.0
  %776 = vmatpush.xpose.msra.mxu0 0.0
  %777 = vmatpush.xpose.msra.mxu0 0.0
  %778 = vmatpush.xpose.msra.mxu0 0.0
  %779 = vmatpush.xpose.msra.mxu0 0.0
  %780 = vmatpush.xpose.msra.mxu0 0.0
  %781 = vmatpush.xpose.msra.mxu0 0.0
  %782 = vmatpush.xpose.msra.mxu0 0.0
  %783 = vmatpush.xpose.msra.mxu0 0.0
  %784 = vmatpush.xpose.msra.mxu0 0.0
  %785 = vmatpush.xpose.msra.mxu0 0.0
  %786 = vmatpush.xpose.msra.mxu0 %v717
  %787 = vmatpush.xpose.msra.mxu0 %v714
  %788 = vmatmul.f32.gmra.mxu0 %v744
  %v789 = vpop.f32.mrf.mxu0
  %v790 = vadd.f32 0.0, %v789
  %791 = vmatmul.f32.gmra.mxu0 %v747
  %v792 = vpop.f32.mrf.mxu0
  %v793 = vadd.f32 0.0, %v792
  %794 = vdwg.mxu0
  %vm795 = vcmask 97280
  %v797 = vsel %vm795, %v790, 0
  %v800 = vsel %vm795, %v793, 0
  %vm802 = vcmask 1043456
  %v804 = vsel %vm802, %v33, 0
  %806 = vmatpush.msra.mxu0 0.0
  %807 = vmatpush.msra.mxu0 0.0
  %808 = vmatpush.msra.mxu0 0.0
  %809 = vmatpush.msra.mxu0 0.0
  %810 = vmatpush.msra.mxu0 0.0
  %811 = vmatpush.msra.mxu0 0.0
  %812 = vmatpush.msra.mxu0 0.0
  %813 = vmatpush.msra.mxu0 0.0
  %814 = vmatpush.msra.mxu0 0.0
  %815 = vmatpush.msra.mxu0 0.0
  %816 = vmatpush.msra.mxu0 0.0
  %817 = vmatpush.msra.mxu0 0.0
  %818 = vmatpush.msra.mxu0 0.0
  %819 = vmatpush.msra.mxu0 0.0
  %820 = vmatpush.msra.mxu0 %v804
  %821 = vmatpush.msra.mxu0 %v32
  %822 = vmatmul.f32.gmra.mxu0 %v797
  %v823 = vpop.f32.mrf.mxu0
  %v824 = vadd.f32 0.0, %v823
  %825 = vmatmul.f32.gmra.mxu0 %v800
  %v826 = vpop.f32.mrf.mxu0
  %v827 = vadd.f32 0.0, %v826
  %828 = vdwg.mxu0
  %v829 = vmul.f32 %v25, %v824
  %v830 = vmul.f32 %v26, %v827
  %v831 = vsel %vm229, %v830, 0.0
  %v832 = vadd.f32 %v829, %v831
  %v833 = vrot.slane %v832, 4
  %v834 = vadd.f32 %v832, %v833
  %v835 = vrot.slane %v834, 2
  %v836 = vadd.f32 %v834, %v835
  %v837 = vrot.slane %v836, 1
  %v838 = vadd.f32 %v836, %v837
  %839 = vst [vmem:[%s2] sm:$0xff] 0.0
  %840 = vst [vmem:[%s2 + $0x8] sm:$0xff] 0.0
  %841 = vst [vmem:[%s2 + $0x10] sm:$0xff] 0.0
  %842 = vst [vmem:[%s2 + $0x18] sm:$0xff] 0.0
  %843 = vst [vmem:[%s2 + $0x20] sm:$0xff] 0.0
  %844 = vst [vmem:[%s2] sm:$0xff] %v737
  %845 = vst [vmem:[%s2 + $0x8] sm:$0xf] %v740
  %846 = vst [vmem:[%s2 + $0x10] sm:$0xff] %v767
  %847 = vst [vmem:[%s2 + $0x18] sm:$0x3] %v770
  %848 = vst [vmem:[%s2 + $0x20] sm:$0x1] %v838
  // Predicated region
  $region10: #{gat_autoencoder_forward.1} parent=0 // pred_check
    _
  $region11: #{gat_autoencoder_forward.1} parent=0 // pred_check_branch
    %850 = sbr.rel (0) target = $region13
  $region12: #{gat_autoencoder_forward.1} parent=0 // pred_region
    _
  $region13: #{gat_autoencoder_forward.1} parent=0 // pred_fallthru
    _
  // Predicated region
  $region14: #{gat_autoencoder_forward.1} parent=0 // pred_check
    _
  $region15: #{gat_autoencoder_forward.1} parent=0 // pred_check_branch
    %852 = sbr.rel (0) target = $region17
  $region16: #{gat_autoencoder_forward.1} parent=0 // pred_region
    _
  $region17: #{gat_autoencoder_forward.1} parent=0 // pred_fallthru
    _

</llo_original>
